<compile_context>
chip_gen: v7x
topology: tpu7x:2x2x1
jax: 0.10.0
libtpu: 0.0.40
codegen_flags: <defaults>
</compile_context>

<pallas_src>
import functools

import jax
import jax.numpy as jnp
from jax.experimental import pallas as pl
from jax.experimental.pallas import tpu as pltpu


# ---------------------------------------------------------------------------
# In-kernel helper: bilinear grid_sample of a (C, H*W) grid at N keypoints
# ---------------------------------------------------------------------------
def _bilinear_sample(grid_ref, x, y, *, H, W):
    # grid_ref: (C, H*W) f32 (NCHW grid flattened over (H, W); column index = y*W + x)
    # x, y    : (1, N) f32 normalized coords in [-1, 1]
    # returns : (C, N) f32 sampled descriptors (keypoints lane-dense)
    # align_corners=False unnormalization
    ix = (x + 1.0) * (W * 0.5) - 0.5
    iy = (y + 1.0) * (H * 0.5) - 0.5
    x0f = jnp.floor(ix)
    y0f = jnp.floor(iy)
    x0 = x0f.astype(jnp.int32)
    y0 = y0f.astype(jnp.int32)
    wx1 = ix - x0f
    wx0 = 1.0 - wx1
    wy1 = iy - y0f
    wy0 = 1.0 - wy1

    N = x.shape[1]
    h_iota = jax.lax.broadcasted_iota(jnp.int32, (H, N), 0)
    w_iota = jax.lax.broadcasted_iota(jnp.int32, (W, N), 0)

    # Separable one-hot bilinear weights (O(N*(H+W)) compares). padding_mode='zeros' is free:
    # out-of-bounds corner indices match no iota row and contribute nothing.
    wy = jnp.where(h_iota == y0, wy0, 0.0) + jnp.where(h_iota == y0 + 1, wy1, 0.0)  # (H, N)
    wx = jnp.where(w_iota == x0, wx0, 0.0) + jnp.where(w_iota == x0 + 1, wx1, 0.0)  # (W, N)

    # wmat[y*W + x, n] = wy[y, n] * wx[x, n]  (at most 4 nonzeros per column)
    wmat = (wy[:, None, :] * wx[None, :, :]).reshape(H * W, N)

    # bf16 MXU matmul, f32 accumulation: (C, HW) x (HW, N) -> (C, N)
    return jnp.dot(grid_ref[...].astype(jnp.bfloat16), wmat.astype(jnp.bfloat16),
                   preferred_element_type=jnp.float32)


# ---------------------------------------------------------------------------
# Fused kernel: sample descriptors for the pair, mutual-NN mask, dual log-softmax, masked NLL
# ---------------------------------------------------------------------------
def _descriptor_loss_kernel(gridA_ref, gridB_ref, ksamp_ref, krow_ref, kcol_ref,
                            out_ref, *, H, W, inv_temp, normalize, thr_sq):
    # ksamp_ref: (4, N) f32 -- raw detector coords [kA_x; kA_y; kB_x; kB_y] (pre-rotation)
    # krow_ref : (N, 4) f32 -- [kA_rot_x, kA_rot_y, kA2B_x, kA2B_y] (row / query side)
    # kcol_ref : (4, N) f32 -- [kB_rot_x; kB_rot_y; kB2A_x; kB2A_y] (col / key side)
    a = _bilinear_sample(gridA_ref, ksamp_ref[0:1, :], ksamp_ref[1:2, :], H=H, W=W)  # (C, N)
    b = _bilinear_sample(gridB_ref, ksamp_ref[2:3, :], ksamp_ref[3:4, :], H=H, W=W)  # (C, M)

    if normalize:
        # eps guards zero descriptors from fully out-of-bounds keypoints (zero padding)
        a = a * jax.lax.rsqrt(jnp.sum(a * a, axis=0, keepdims=True) + 1e-12)
        b = b * jax.lax.rsqrt(jnp.sum(b * b, axis=0, keepdims=True) + 1e-12)
    if inv_temp != 1.0:
        a = a * inv_temp  # fold temperature into the small (C, N) operand, not the (N, M) matrix

    # corr[n, m] = inv_temp * <desc_A[n], desc_B[m]>  (bf16 MXU inputs, f32 accumulation)
    corr = jax.lax.dot_general(
        a.astype(jnp.bfloat16), b.astype(jnp.bfloat16),
        dimension_numbers=(((0,), (0,)), ((), ())),
        preferred_element_type=jnp.float32)                          # (N, M)

    # ---- mutual nearest neighbours on squared distances (sqrt-free, VPU broadcast) ----
    kA_x = krow_ref[:, 0:1]; kA_y = krow_ref[:, 1:2]                 # (N, 1) rotated A
    kA2B_x = krow_ref[:, 2:3]; kA2B_y = krow_ref[:, 3:4]             # (N, 1) A warped to B
    kB_x = kcol_ref[0:1, :]; kB_y = kcol_ref[1:2, :]                 # (1, M) rotated B
    kB2A_x = kcol_ref[2:3, :]; kB2A_y = kcol_ref[3:4, :]             # (1, M) B warped to A

    dBx = kA2B_x - kB_x; dBy = kA2B_y - kB_y
    D_B = dBx * dBx + dBy * dBy                                      # (N, M) squared dist
    dAx = kA_x - kB2A_x; dAy = kA_y - kB2A_y
    D_A = dAx * dAx + dAy * dAy                                      # (N, M) squared dist

    minB = jnp.min(D_B, axis=-1, keepdims=True)                      # (N, 1) row min (dim=-1)
    minA = jnp.min(D_A, axis=0, keepdims=True)                       # (1, M) col min (dim=-2)
    # threshold on the min vectors is equivalent to thresholding the full matrices under ==min
    mask = (D_B == minB) & (D_A == minA) & (minB < thr_sq) & (minA < thr_sq)
    maskf = mask.astype(jnp.float32)

    # ---- dual log-softmax with a single full-size exp pass ----
    m1 = jnp.max(corr, axis=-1, keepdims=True)                       # (N, 1) row max
    g = jnp.max(m1)                                                  # global max (scalar)
    E = jnp.exp(corr - m1)                                           # (N, M)
    lse1 = m1 + jnp.log(jnp.sum(E, axis=-1, keepdims=True))          # logsumexp over dim -1
    w = jnp.exp(m1 - g)                                              # (N, 1)
    lse0 = g + jnp.log(jnp.sum(E * w, axis=0, keepdims=True))        # logsumexp over dim -2

    # sum over matches of -logP = lse1 + lse0 - 2*corr, factored through the mask so logP is
    # never materialized: sum(rowcnt*lse1) + sum(colcnt*lse0) - 2*sum(mask*corr)
    rowcnt = jnp.sum(maskf, axis=-1, keepdims=True)                  # (N, 1)
    colcnt = jnp.sum(maskf, axis=0, keepdims=True)                   # (1, M)
    s = jnp.sum(rowcnt * lse1) + jnp.sum(colcnt * lse0) - 2.0 * jnp.sum(maskf * corr)
    c = jnp.sum(rowcnt)

    row = jax.lax.broadcasted_iota(jnp.int32, (8, 128), 0)
    out_ref[...] = jnp.where(row == 0, s, 0.0) + jnp.where(row == 1, c, 0.0)


def descriptor_pair_loss_terms(grid_flat, ksamp, krow, kcol, num_pairs, H, W,
                               inv_temp, normalize):
    # grid_flat: (2B, C, H*W) f32; ksamp/kcol: (B, 4, N); krow: (B, N, 4)
    _, C, HW = grid_flat.shape
    N = ksamp.shape[2]
    kernel = functools.partial(_descriptor_loss_kernel, H=H, W=W,
                               inv_temp=float(inv_temp), normalize=bool(normalize),
                               thr_sq=0.01 ** 2)
    return pl.pallas_call(
        kernel,
        out_shape=jax.ShapeDtypeStruct((num_pairs, 8, 128), jnp.float32),
        grid=(num_pairs,),
        in_specs=[
            pl.BlockSpec((None, C, HW), lambda b: (b, 0, 0)),              # image A of pair b
            pl.BlockSpec((None, C, HW), lambda b: (b + num_pairs, 0, 0)),  # image B of pair b
            pl.BlockSpec((None, 4, N), lambda b: (b, 0, 0)),
            pl.BlockSpec((None, N, 4), lambda b: (b, 0, 0)),
            pl.BlockSpec((None, 4, N), lambda b: (b, 0, 0)),
        ],
        out_specs=pl.BlockSpec((None, 8, 128), lambda b: (b, 0, 0)),
        compiler_params=pltpu.CompilerParams(dimension_semantics=("parallel",)),
    )(grid_flat, grid_flat, ksamp, krow, kcol)


# ---------------------------------------------------------------------------
# JAX glue (layout packing, coordinate transforms, aggregation)
# ---------------------------------------------------------------------------
def _rotate_kpts(k, rot):
    # Discrete 90-degree rotations of normalized keypoint coords (continuous_rot=False path).
    if rot == 1:
        return jnp.stack([-k[..., 1], k[..., 0]], axis=-1)
    if rot == 2:
        return -k
    if rot == 3:
        return jnp.stack([k[..., 1], -k[..., 0]], axis=-1)
    return k


def _homog_transform(H_mat, pts):
    # pts: (B, N, 2) normalized coords; H_mat: (B, 3, 3)
    ones = jnp.ones_like(pts[..., :1])
    xyz = jnp.concatenate([pts, ones], axis=-1)               # (B, N, 3)
    warped = jnp.einsum("bij,bnj->bni", H_mat, xyz)           # (B, N, 3)
    return warped[..., :2] / warped[..., 2:3]


def descriptor_loss_forward(description_grid, keypoints, homog_A_to_B,
                            rot_A=0, rot_B=0, inv_temp=1.0, normalize=False):
    """Forward pass of DescriptorLoss (homography supervision path).

    description_grid: (2B, C, H, W) f32 -- outputs['description_grid'] (NCHW)
    keypoints:        (2B, N, 2)   f32 -- detector.detect(...)['keypoints'], (x, y) in [-1,1]
    homog_A_to_B:     (B, 3, 3)    f32 -- batch['Homog_A_to_B']
    """
    two_b, C, H, W = description_grid.shape
    B = two_b // 2

    # NCHW is already descriptor-major: flatten spatial dims only -> (2B, C, H*W)
    grid_flat = description_grid.astype(jnp.float32).reshape(two_b, C, H * W)
    kpts = keypoints.astype(jnp.float32)                      # (2B, N, 2)
    kpts_A, kpts_B = jnp.split(kpts, 2, axis=0)               # (B, N, 2) each

    # Sampling uses the raw detector keypoints (rotation is applied AFTER grid_sample,
    # exactly as in the reference).
    ksamp = jnp.concatenate([jnp.transpose(kpts_A, (0, 2, 1)),
                             jnp.transpose(kpts_B, (0, 2, 1))], axis=1)   # (B, 4, N)

    kpts_A_rot = _rotate_kpts(kpts_A, rot_A)
    kpts_B_rot = _rotate_kpts(kpts_B, rot_B)
    kpts_A_to_B = _homog_transform(homog_A_to_B, kpts_A_rot)
    kpts_B_to_A = _homog_transform(jnp.linalg.inv(homog_A_to_B), kpts_B_rot)

    #   krow (B, N, 4): [kA_rot_x, kA_rot_y, kA2B_x, kA2B_y]   -> used as (N, 1) columns
    #   kcol (B, 4, N): [kB_rot_x; kB_rot_y; kB2A_x; kB2A_y]   -> used as (1, M) rows (lane-dense)
    krow = jnp.concatenate([kpts_A_rot, kpts_A_to_B], axis=-1)
    kcol = jnp.concatenate([jnp.transpose(kpts_B_rot, (0, 2, 1)),
                            jnp.transpose(kpts_B_to_A, (0, 2, 1))], axis=1)

    out = descriptor_pair_loss_terms(grid_flat, ksamp, krow, kcol, B, H, W,
                                     inv_temp, normalize)      # (B, 8, 128)
    total_sum = jnp.sum(out[:, 0, 0])
    total_cnt = jnp.sum(out[:, 1, 0])
    # -logP[inds].mean() over all mutual-NN matches; guard 0/0 when no matches pass threshold
    return total_sum / jnp.maximum(total_cnt, 1.0)


if __name__ == "__main__":
    key = jax.random.PRNGKey(0)
    B, C, H, W, N = 2, 32, 16, 16, 128  # B image pairs, descriptor dim C, grid HxW, N keypoints

    k_grid, k_kpts = jax.random.split(key)
    description_grid = jax.random.normal(k_grid, (2 * B, C, H, W), dtype=jnp.float32)

    # Stand-in for detector.detect output: keypoints in [-1, 1].  A/B keypoints are identical
    # and the homography is identity so mutual-NN matches exist deterministically.
    kA = jax.random.uniform(k_kpts, (B, N, 2), dtype=jnp.float32, minval=-0.95, maxval=0.95)
    keypoints = jnp.concatenate([kA, kA], axis=0)  # (2B, N, 2)

    homog = jnp.tile(jnp.eye(3, dtype=jnp.float32)[None], (B, 1, 1))  # batch['Homog_A_to_B']

    loss = descriptor_loss_forward(description_grid, keypoints, homog,
                                   rot_A=0, rot_B=0, inv_temp=1.0, normalize=False)
    loss = jax.block_until_ready(loss)
    assert bool(jnp.isfinite(loss)), "loss is not finite"
    print("KERNEL_OK")
</pallas_src>

<mosaic_0001>
module attributes {stable_mosaic.version = 11 : i64} {
  func.func @_descriptor_loss_kernel(%arg0: i32, %arg1: memref<1x32x256xf32, #tpu.memory_space<vmem>>, %arg2: memref<1x32x256xf32, #tpu.memory_space<vmem>>, %arg3: memref<1x4x128xf32, #tpu.memory_space<vmem>>, %arg4: memref<1x128x4xf32, #tpu.memory_space<vmem>>, %arg5: memref<1x4x128xf32, #tpu.memory_space<vmem>>, %arg6: memref<1x8x128xf32, #tpu.memory_space<vmem>>) attributes {dimension_semantics = [#tpu.dimension_semantics<parallel>], iteration_bounds = array<i64: 2>, scalar_prefetch = 0 : i64, scratch_operands = 0 : i64, tpu.core_type = #tpu.core_type<tc>, window_params = [{transform_indices = @transform_0, window_bounds = array<i64: 1, 32, 256>}, {transform_indices = @transform_1, window_bounds = array<i64: 1, 32, 256>}, {transform_indices = @transform_2, window_bounds = array<i64: 1, 4, 128>}, {transform_indices = @transform_3, window_bounds = array<i64: 1, 128, 4>}, {transform_indices = @transform_4, window_bounds = array<i64: 1, 4, 128>}, {transform_indices = @transform_5, window_bounds = array<i64: 1, 8, 128>}]} {
    %c0 = arith.constant 0 : index
    %c0_0 = arith.constant 0 : index
    %c0_1 = arith.constant 0 : index
    %0 = vector.load %arg3[%c0, %c0_0, %c0_1] : memref<1x4x128xf32, #tpu.memory_space<vmem>>, vector<1x1x128xf32>
    %1 = vector.shape_cast %0 : vector<1x1x128xf32> to vector<1x128xf32>
    %c0_2 = arith.constant 0 : index
    %c1 = arith.constant 1 : index
    %c0_3 = arith.constant 0 : index
    %2 = vector.load %arg3[%c0_2, %c1, %c0_3] : memref<1x4x128xf32, #tpu.memory_space<vmem>>, vector<1x1x128xf32>
    %3 = vector.shape_cast %2 : vector<1x1x128xf32> to vector<1x128xf32>
    %cst = arith.constant 1.000000e+00 : f32
    %4 = vector.broadcast %cst : f32 to vector<1x128xf32>
    %5 = arith.addf %1, %4 : vector<1x128xf32>
    %cst_4 = arith.constant 8.000000e+00 : f32
    %6 = vector.broadcast %cst_4 : f32 to vector<1x128xf32>
    %7 = arith.mulf %5, %6 : vector<1x128xf32>
    %cst_5 = arith.constant 5.000000e-01 : f32
    %8 = vector.broadcast %cst_5 : f32 to vector<1x128xf32>
    %9 = arith.subf %7, %8 : vector<1x128xf32>
    %cst_6 = arith.constant 1.000000e+00 : f32
    %10 = vector.broadcast %cst_6 : f32 to vector<1x128xf32>
    %11 = arith.addf %3, %10 : vector<1x128xf32>
    %cst_7 = arith.constant 8.000000e+00 : f32
    %12 = vector.broadcast %cst_7 : f32 to vector<1x128xf32>
    %13 = arith.mulf %11, %12 : vector<1x128xf32>
    %cst_8 = arith.constant 5.000000e-01 : f32
    %14 = vector.broadcast %cst_8 : f32 to vector<1x128xf32>
    %15 = arith.subf %13, %14 : vector<1x128xf32>
    %16 = math.floor %9 : vector<1x128xf32>
    %17 = math.floor %15 : vector<1x128xf32>
    %18 = arith.fptosi %16 : vector<1x128xf32> to vector<1x128xi32>
    %19 = arith.fptosi %17 : vector<1x128xf32> to vector<1x128xi32>
    %20 = arith.subf %9, %16 : vector<1x128xf32>
    %cst_9 = arith.constant 1.000000e+00 : f32
    %21 = vector.broadcast %cst_9 : f32 to vector<1x128xf32>
    %22 = arith.subf %21, %20 : vector<1x128xf32>
    %23 = arith.subf %15, %17 : vector<1x128xf32>
    %cst_10 = arith.constant 1.000000e+00 : f32
    %24 = vector.broadcast %cst_10 : f32 to vector<1x128xf32>
    %25 = arith.subf %24, %23 : vector<1x128xf32>
    %26 = tpu.iota {dimensions = array<i32: 0>} : vector<16x128xi32>
    %27 = tpu.iota {dimensions = array<i32: 0>} : vector<16x128xi32>
    %28 = vector.broadcast %19 : vector<1x128xi32> to vector<16x128xi32>
    %29 = arith.cmpi eq, %26, %28 : vector<16x128xi32>
    %cst_11 = arith.constant 0.000000e+00 : f32
    %30 = vector.shape_cast %25 : vector<1x128xf32> to vector<1x128xf32>
    %31 = vector.broadcast %30 : vector<1x128xf32> to vector<16x128xf32>
    %32 = vector.broadcast %cst_11 : f32 to vector<16x128xf32>
    %33 = arith.select %29, %31, %32 : vector<16x128xi1>, vector<16x128xf32>
    %c1_i32 = arith.constant 1 : i32
    %34 = vector.broadcast %c1_i32 : i32 to vector<1x128xi32>
    %35 = arith.addi %19, %34 : vector<1x128xi32>
    %36 = vector.broadcast %35 : vector<1x128xi32> to vector<16x128xi32>
    %37 = arith.cmpi eq, %26, %36 : vector<16x128xi32>
    %cst_12 = arith.constant 0.000000e+00 : f32
    %38 = vector.shape_cast %23 : vector<1x128xf32> to vector<1x128xf32>
    %39 = vector.broadcast %38 : vector<1x128xf32> to vector<16x128xf32>
    %40 = vector.broadcast %cst_12 : f32 to vector<16x128xf32>
    %41 = arith.select %37, %39, %40 : vector<16x128xi1>, vector<16x128xf32>
    %42 = arith.addf %33, %41 : vector<16x128xf32>
    %43 = vector.broadcast %18 : vector<1x128xi32> to vector<16x128xi32>
    %44 = arith.cmpi eq, %27, %43 : vector<16x128xi32>
    %cst_13 = arith.constant 0.000000e+00 : f32
    %45 = vector.shape_cast %22 : vector<1x128xf32> to vector<1x128xf32>
    %46 = vector.broadcast %45 : vector<1x128xf32> to vector<16x128xf32>
    %47 = vector.broadcast %cst_13 : f32 to vector<16x128xf32>
    %48 = arith.select %44, %46, %47 : vector<16x128xi1>, vector<16x128xf32>
    %c1_i32_14 = arith.constant 1 : i32
    %49 = vector.broadcast %c1_i32_14 : i32 to vector<1x128xi32>
    %50 = arith.addi %18, %49 : vector<1x128xi32>
    %51 = vector.broadcast %50 : vector<1x128xi32> to vector<16x128xi32>
    %52 = arith.cmpi eq, %27, %51 : vector<16x128xi32>
    %cst_15 = arith.constant 0.000000e+00 : f32
    %53 = vector.shape_cast %20 : vector<1x128xf32> to vector<1x128xf32>
    %54 = vector.broadcast %53 : vector<1x128xf32> to vector<16x128xf32>
    %55 = vector.broadcast %cst_15 : f32 to vector<16x128xf32>
    %56 = arith.select %52, %54, %55 : vector<16x128xi1>, vector<16x128xf32>
    %57 = arith.addf %48, %56 : vector<16x128xf32>
    %58 = vector.shape_cast %42 : vector<16x128xf32> to vector<16x1x128xf32>
    %59 = vector.shape_cast %57 : vector<16x128xf32> to vector<1x16x128xf32>
    %60 = vector.broadcast %58 : vector<16x1x128xf32> to vector<16x16x128xf32>
    %61 = vector.broadcast %59 : vector<1x16x128xf32> to vector<16x16x128xf32>
    %62 = arith.mulf %60, %61 : vector<16x16x128xf32>
    %63 = vector.shape_cast %62 : vector<16x16x128xf32> to vector<256x128xf32>
    %c0_16 = arith.constant 0 : index
    %c0_17 = arith.constant 0 : index
    %c0_18 = arith.constant 0 : index
    %64 = vector.load %arg1[%c0_16, %c0_17, %c0_18] : memref<1x32x256xf32, #tpu.memory_space<vmem>>, vector<1x32x256xf32>
    %65 = vector.shape_cast %64 : vector<1x32x256xf32> to vector<32x256xf32>
    %66 = arith.truncf %65 : vector<32x256xf32> to vector<32x256xbf16>
    %67 = arith.truncf %63 : vector<256x128xf32> to vector<256x128xbf16>
    %cst_19 = arith.constant dense<0.000000e+00> : vector<32x128xf32>
    %68 = tpu.matmul %66, %67, %cst_19 {dimension_numbers = #tpu.dot_dimension_numbers<[1], [0], [0], [1], [0, 0, 1, 1], [], []>} : vector<32x256xbf16>, vector<256x128xbf16>, vector<32x128xf32> -> vector<32x128xf32>
    %c0_20 = arith.constant 0 : index
    %c2 = arith.constant 2 : index
    %c0_21 = arith.constant 0 : index
    %69 = vector.load %arg3[%c0_20, %c2, %c0_21] : memref<1x4x128xf32, #tpu.memory_space<vmem>>, vector<1x1x128xf32>
    %70 = vector.shape_cast %69 : vector<1x1x128xf32> to vector<1x128xf32>
    %c0_22 = arith.constant 0 : index
    %c3 = arith.constant 3 : index
    %c0_23 = arith.constant 0 : index
    %71 = vector.load %arg3[%c0_22, %c3, %c0_23] : memref<1x4x128xf32, #tpu.memory_space<vmem>>, vector<1x1x128xf32>
    %72 = vector.shape_cast %71 : vector<1x1x128xf32> to vector<1x128xf32>
    %cst_24 = arith.constant 1.000000e+00 : f32
    %73 = vector.broadcast %cst_24 : f32 to vector<1x128xf32>
    %74 = arith.addf %70, %73 : vector<1x128xf32>
    %cst_25 = arith.constant 8.000000e+00 : f32
    %75 = vector.broadcast %cst_25 : f32 to vector<1x128xf32>
    %76 = arith.mulf %74, %75 : vector<1x128xf32>
    %cst_26 = arith.constant 5.000000e-01 : f32
    %77 = vector.broadcast %cst_26 : f32 to vector<1x128xf32>
    %78 = arith.subf %76, %77 : vector<1x128xf32>
    %cst_27 = arith.constant 1.000000e+00 : f32
    %79 = vector.broadcast %cst_27 : f32 to vector<1x128xf32>
    %80 = arith.addf %72, %79 : vector<1x128xf32>
    %cst_28 = arith.constant 8.000000e+00 : f32
    %81 = vector.broadcast %cst_28 : f32 to vector<1x128xf32>
    %82 = arith.mulf %80, %81 : vector<1x128xf32>
    %cst_29 = arith.constant 5.000000e-01 : f32
    %83 = vector.broadcast %cst_29 : f32 to vector<1x128xf32>
    %84 = arith.subf %82, %83 : vector<1x128xf32>
    %85 = math.floor %78 : vector<1x128xf32>
    %86 = math.floor %84 : vector<1x128xf32>
    %87 = arith.fptosi %85 : vector<1x128xf32> to vector<1x128xi32>
    %88 = arith.fptosi %86 : vector<1x128xf32> to vector<1x128xi32>
    %89 = arith.subf %78, %85 : vector<1x128xf32>
    %cst_30 = arith.constant 1.000000e+00 : f32
    %90 = vector.broadcast %cst_30 : f32 to vector<1x128xf32>
    %91 = arith.subf %90, %89 : vector<1x128xf32>
    %92 = arith.subf %84, %86 : vector<1x128xf32>
    %cst_31 = arith.constant 1.000000e+00 : f32
    %93 = vector.broadcast %cst_31 : f32 to vector<1x128xf32>
    %94 = arith.subf %93, %92 : vector<1x128xf32>
    %95 = tpu.iota {dimensions = array<i32: 0>} : vector<16x128xi32>
    %96 = tpu.iota {dimensions = array<i32: 0>} : vector<16x128xi32>
    %97 = vector.broadcast %88 : vector<1x128xi32> to vector<16x128xi32>
    %98 = arith.cmpi eq, %95, %97 : vector<16x128xi32>
    %cst_32 = arith.constant 0.000000e+00 : f32
    %99 = vector.shape_cast %94 : vector<1x128xf32> to vector<1x128xf32>
    %100 = vector.broadcast %99 : vector<1x128xf32> to vector<16x128xf32>
    %101 = vector.broadcast %cst_32 : f32 to vector<16x128xf32>
    %102 = arith.select %98, %100, %101 : vector<16x128xi1>, vector<16x128xf32>
    %c1_i32_33 = arith.constant 1 : i32
    %103 = vector.broadcast %c1_i32_33 : i32 to vector<1x128xi32>
    %104 = arith.addi %88, %103 : vector<1x128xi32>
    %105 = vector.broadcast %104 : vector<1x128xi32> to vector<16x128xi32>
    %106 = arith.cmpi eq, %95, %105 : vector<16x128xi32>
    %cst_34 = arith.constant 0.000000e+00 : f32
    %107 = vector.shape_cast %92 : vector<1x128xf32> to vector<1x128xf32>
    %108 = vector.broadcast %107 : vector<1x128xf32> to vector<16x128xf32>
    %109 = vector.broadcast %cst_34 : f32 to vector<16x128xf32>
    %110 = arith.select %106, %108, %109 : vector<16x128xi1>, vector<16x128xf32>
    %111 = arith.addf %102, %110 : vector<16x128xf32>
    %112 = vector.broadcast %87 : vector<1x128xi32> to vector<16x128xi32>
    %113 = arith.cmpi eq, %96, %112 : vector<16x128xi32>
    %cst_35 = arith.constant 0.000000e+00 : f32
    %114 = vector.shape_cast %91 : vector<1x128xf32> to vector<1x128xf32>
    %115 = vector.broadcast %114 : vector<1x128xf32> to vector<16x128xf32>
    %116 = vector.broadcast %cst_35 : f32 to vector<16x128xf32>
    %117 = arith.select %113, %115, %116 : vector<16x128xi1>, vector<16x128xf32>
    %c1_i32_36 = arith.constant 1 : i32
    %118 = vector.broadcast %c1_i32_36 : i32 to vector<1x128xi32>
    %119 = arith.addi %87, %118 : vector<1x128xi32>
    %120 = vector.broadcast %119 : vector<1x128xi32> to vector<16x128xi32>
    %121 = arith.cmpi eq, %96, %120 : vector<16x128xi32>
    %cst_37 = arith.constant 0.000000e+00 : f32
    %122 = vector.shape_cast %89 : vector<1x128xf32> to vector<1x128xf32>
    %123 = vector.broadcast %122 : vector<1x128xf32> to vector<16x128xf32>
    %124 = vector.broadcast %cst_37 : f32 to vector<16x128xf32>
    %125 = arith.select %121, %123, %124 : vector<16x128xi1>, vector<16x128xf32>
    %126 = arith.addf %117, %125 : vector<16x128xf32>
    %127 = vector.shape_cast %111 : vector<16x128xf32> to vector<16x1x128xf32>
    %128 = vector.shape_cast %126 : vector<16x128xf32> to vector<1x16x128xf32>
    %129 = vector.broadcast %127 : vector<16x1x128xf32> to vector<16x16x128xf32>
    %130 = vector.broadcast %128 : vector<1x16x128xf32> to vector<16x16x128xf32>
    %131 = arith.mulf %129, %130 : vector<16x16x128xf32>
    %132 = vector.shape_cast %131 : vector<16x16x128xf32> to vector<256x128xf32>
    %c0_38 = arith.constant 0 : index
    %c0_39 = arith.constant 0 : index
    %c0_40 = arith.constant 0 : index
    %133 = vector.load %arg2[%c0_38, %c0_39, %c0_40] : memref<1x32x256xf32, #tpu.memory_space<vmem>>, vector<1x32x256xf32>
    %134 = vector.shape_cast %133 : vector<1x32x256xf32> to vector<32x256xf32>
    %135 = arith.truncf %134 : vector<32x256xf32> to vector<32x256xbf16>
    %136 = arith.truncf %132 : vector<256x128xf32> to vector<256x128xbf16>
    %cst_41 = arith.constant dense<0.000000e+00> : vector<32x128xf32>
    %137 = tpu.matmul %135, %136, %cst_41 {dimension_numbers = #tpu.dot_dimension_numbers<[1], [0], [0], [1], [0, 0, 1, 1], [], []>} : vector<32x256xbf16>, vector<256x128xbf16>, vector<32x128xf32> -> vector<32x128xf32>
    %138 = arith.truncf %68 : vector<32x128xf32> to vector<32x128xbf16>
    %139 = arith.truncf %137 : vector<32x128xf32> to vector<32x128xbf16>
    %cst_42 = arith.constant dense<0.000000e+00> : vector<128x128xf32>
    %140 = tpu.matmul %138, %139, %cst_42 {dimension_numbers = #tpu.dot_dimension_numbers<[0], [0], [1], [1], [0, 1, 1, 1], [], []>} : vector<32x128xbf16>, vector<32x128xbf16>, vector<128x128xf32> -> vector<128x128xf32>
    %c0_43 = arith.constant 0 : index
    %c0_44 = arith.constant 0 : index
    %c0_45 = arith.constant 0 : index
    %141 = vector.load %arg4[%c0_43, %c0_44, %c0_45] : memref<1x128x4xf32, #tpu.memory_space<vmem>>, vector<1x128x1xf32>
    %142 = vector.shape_cast %141 : vector<1x128x1xf32> to vector<128x1xf32>
    %c0_46 = arith.constant 0 : index
    %c0_47 = arith.constant 0 : index
    %c1_48 = arith.constant 1 : index
    %143 = vector.load %arg4[%c0_46, %c0_47, %c1_48] : memref<1x128x4xf32, #tpu.memory_space<vmem>>, vector<1x128x1xf32>
    %144 = vector.shape_cast %143 : vector<1x128x1xf32> to vector<128x1xf32>
    %c0_49 = arith.constant 0 : index
    %c0_50 = arith.constant 0 : index
    %c2_51 = arith.constant 2 : index
    %145 = vector.load %arg4[%c0_49, %c0_50, %c2_51] : memref<1x128x4xf32, #tpu.memory_space<vmem>>, vector<1x128x1xf32>
    %146 = vector.shape_cast %145 : vector<1x128x1xf32> to vector<128x1xf32>
    %c0_52 = arith.constant 0 : index
    %c0_53 = arith.constant 0 : index
    %c3_54 = arith.constant 3 : index
    %147 = vector.load %arg4[%c0_52, %c0_53, %c3_54] : memref<1x128x4xf32, #tpu.memory_space<vmem>>, vector<1x128x1xf32>
    %148 = vector.shape_cast %147 : vector<1x128x1xf32> to vector<128x1xf32>
    %c0_55 = arith.constant 0 : index
    %c0_56 = arith.constant 0 : index
    %c0_57 = arith.constant 0 : index
    %149 = vector.load %arg5[%c0_55, %c0_56, %c0_57] : memref<1x4x128xf32, #tpu.memory_space<vmem>>, vector<1x1x128xf32>
    %150 = vector.shape_cast %149 : vector<1x1x128xf32> to vector<1x128xf32>
    %c0_58 = arith.constant 0 : index
    %c1_59 = arith.constant 1 : index
    %c0_60 = arith.constant 0 : index
    %151 = vector.load %arg5[%c0_58, %c1_59, %c0_60] : memref<1x4x128xf32, #tpu.memory_space<vmem>>, vector<1x1x128xf32>
    %152 = vector.shape_cast %151 : vector<1x1x128xf32> to vector<1x128xf32>
    %c0_61 = arith.constant 0 : index
    %c2_62 = arith.constant 2 : index
    %c0_63 = arith.constant 0 : index
    %153 = vector.load %arg5[%c0_61, %c2_62, %c0_63] : memref<1x4x128xf32, #tpu.memory_space<vmem>>, vector<1x1x128xf32>
    %154 = vector.shape_cast %153 : vector<1x1x128xf32> to vector<1x128xf32>
    %c0_64 = arith.constant 0 : index
    %c3_65 = arith.constant 3 : index
    %c0_66 = arith.constant 0 : index
    %155 = vector.load %arg5[%c0_64, %c3_65, %c0_66] : memref<1x4x128xf32, #tpu.memory_space<vmem>>, vector<1x1x128xf32>
    %156 = vector.shape_cast %155 : vector<1x1x128xf32> to vector<1x128xf32>
    %157 = vector.broadcast %146 : vector<128x1xf32> to vector<128x128xf32>
    %158 = vector.broadcast %150 : vector<1x128xf32> to vector<128x128xf32>
    %159 = arith.subf %157, %158 : vector<128x128xf32>
    %160 = vector.broadcast %148 : vector<128x1xf32> to vector<128x128xf32>
    %161 = vector.broadcast %152 : vector<1x128xf32> to vector<128x128xf32>
    %162 = arith.subf %160, %161 : vector<128x128xf32>
    %163 = arith.mulf %159, %159 : vector<128x128xf32>
    %164 = arith.mulf %162, %162 : vector<128x128xf32>
    %165 = arith.addf %163, %164 : vector<128x128xf32>
    %166 = vector.broadcast %142 : vector<128x1xf32> to vector<128x128xf32>
    %167 = vector.broadcast %154 : vector<1x128xf32> to vector<128x128xf32>
    %168 = arith.subf %166, %167 : vector<128x128xf32>
    %169 = vector.broadcast %144 : vector<128x1xf32> to vector<128x128xf32>
    %170 = vector.broadcast %156 : vector<1x128xf32> to vector<128x128xf32>
    %171 = arith.subf %169, %170 : vector<128x128xf32>
    %172 = arith.mulf %168, %168 : vector<128x128xf32>
    %173 = arith.mulf %171, %171 : vector<128x128xf32>
    %174 = arith.addf %172, %173 : vector<128x128xf32>
    %cst_67 = arith.constant dense<0x7F800000> : vector<128xf32>
    %175 = vector.multi_reduction <minimumf>, %165, %cst_67 [1] : vector<128x128xf32> to vector<128xf32>
    %176 = vector.shape_cast %175 : vector<128xf32> to vector<128x1xf32>
    %cst_68 = arith.constant dense<0x7F800000> : vector<128xf32>
    %177 = vector.multi_reduction <minimumf>, %174, %cst_68 [0] : vector<128x128xf32> to vector<128xf32>
    %178 = vector.shape_cast %177 : vector<128xf32> to vector<1x128xf32>
    %179 = vector.broadcast %176 : vector<128x1xf32> to vector<128x128xf32>
    %180 = arith.cmpf oeq, %165, %179 : vector<128x128xf32>
    %181 = vector.broadcast %178 : vector<1x128xf32> to vector<128x128xf32>
    %182 = arith.cmpf oeq, %174, %181 : vector<128x128xf32>
    %183 = arith.andi %180, %182 : vector<128x128xi1>
    %cst_69 = arith.constant 9.99999974E-5 : f32
    %184 = vector.broadcast %cst_69 : f32 to vector<128x1xf32>
    %185 = arith.cmpf olt, %176, %184 : vector<128x1xf32>
    %186 = vector.broadcast %185 : vector<128x1xi1> to vector<128x128xi1>
    %187 = arith.andi %183, %186 : vector<128x128xi1>
    %cst_70 = arith.constant 9.99999974E-5 : f32
    %188 = vector.broadcast %cst_70 : f32 to vector<1x128xf32>
    %189 = arith.cmpf olt, %178, %188 : vector<1x128xf32>
    %190 = vector.broadcast %189 : vector<1x128xi1> to vector<128x128xi1>
    %191 = arith.andi %187, %190 : vector<128x128xi1>
    %192 = arith.extui %191 : vector<128x128xi1> to vector<128x128xi32>
    %193 = arith.sitofp %192 : vector<128x128xi32> to vector<128x128xf32>
    %cst_71 = arith.constant dense<0xFF800000> : vector<128xf32>
    %194 = vector.multi_reduction <maximumf>, %140, %cst_71 [1] : vector<128x128xf32> to vector<128xf32>
    %195 = vector.shape_cast %194 : vector<128xf32> to vector<128x1xf32>
    %196 = vector.shape_cast %195 : vector<128x1xf32> to vector<1x128x1xf32>
    %cst_72 = arith.constant dense<0xFF800000> : vector<1xf32>
    %197 = vector.multi_reduction <maximumf>, %196, %cst_72 [1, 2] : vector<1x128x1xf32> to vector<1xf32>
    %198 = vector.shape_cast %197 : vector<1xf32> to vector<1x1x1xf32>
    %199 = vector.extract %198[0, 0, 0] : f32 from vector<1x1x1xf32>
    %200 = vector.broadcast %195 : vector<128x1xf32> to vector<128x128xf32>
    %201 = arith.subf %140, %200 : vector<128x128xf32>
    %202 = math.exp %201 : vector<128x128xf32>
    %cst_73 = arith.constant dense<0.000000e+00> : vector<128xf32>
    %203 = vector.multi_reduction <add>, %202, %cst_73 [1] : vector<128x128xf32> to vector<128xf32>
    %204 = vector.shape_cast %203 : vector<128xf32> to vector<128x1xf32>
    %205 = math.log %204 : vector<128x1xf32>
    %206 = arith.addf %195, %205 : vector<128x1xf32>
    %207 = vector.broadcast %199 : f32 to vector<128x1xf32>
    %208 = arith.subf %195, %207 : vector<128x1xf32>
    %209 = math.exp %208 : vector<128x1xf32>
    %210 = vector.broadcast %209 : vector<128x1xf32> to vector<128x128xf32>
    %211 = arith.mulf %202, %210 : vector<128x128xf32>
    %cst_74 = arith.constant dense<0.000000e+00> : vector<128xf32>
    %212 = vector.multi_reduction <add>, %211, %cst_74 [0] : vector<128x128xf32> to vector<128xf32>
    %213 = vector.shape_cast %212 : vector<128xf32> to vector<1x128xf32>
    %214 = math.log %213 : vector<1x128xf32>
    %215 = vector.broadcast %199 : f32 to vector<1x128xf32>
    %216 = arith.addf %215, %214 : vector<1x128xf32>
    %cst_75 = arith.constant dense<0.000000e+00> : vector<128xf32>
    %217 = vector.multi_reduction <add>, %193, %cst_75 [1] : vector<128x128xf32> to vector<128xf32>
    %218 = vector.shape_cast %217 : vector<128xf32> to vector<128x1xf32>
    %cst_76 = arith.constant dense<0.000000e+00> : vector<128xf32>
    %219 = vector.multi_reduction <add>, %193, %cst_76 [0] : vector<128x128xf32> to vector<128xf32>
    %220 = vector.shape_cast %219 : vector<128xf32> to vector<1x128xf32>
    %221 = arith.mulf %218, %206 : vector<128x1xf32>
    %222 = vector.shape_cast %221 : vector<128x1xf32> to vector<1x128x1xf32>
    %cst_77 = arith.constant dense<0.000000e+00> : vector<1xf32>
    %223 = vector.multi_reduction <add>, %222, %cst_77 [1, 2] : vector<1x128x1xf32> to vector<1xf32>
    %224 = vector.shape_cast %223 : vector<1xf32> to vector<1x1x1xf32>
    %225 = vector.extract %224[0, 0, 0] : f32 from vector<1x1x1xf32>
    %226 = arith.mulf %220, %216 : vector<1x128xf32>
    %227 = vector.shape_cast %226 : vector<1x128xf32> to vector<1x1x128xf32>
    %cst_78 = arith.constant dense<0.000000e+00> : vector<1xf32>
    %228 = vector.multi_reduction <add>, %227, %cst_78 [1, 2] : vector<1x1x128xf32> to vector<1xf32>
    %229 = vector.shape_cast %228 : vector<1xf32> to vector<1x1x1xf32>
    %230 = vector.extract %229[0, 0, 0] : f32 from vector<1x1x1xf32>
    %231 = arith.addf %225, %230 : f32
    %232 = arith.mulf %193, %140 : vector<128x128xf32>
    %233 = vector.shape_cast %232 : vector<128x128xf32> to vector<1x128x128xf32>
    %cst_79 = arith.constant dense<0.000000e+00> : vector<1xf32>
    %234 = vector.multi_reduction <add>, %233, %cst_79 [1, 2] : vector<1x128x128xf32> to vector<1xf32>
    %235 = vector.shape_cast %234 : vector<1xf32> to vector<1x1x1xf32>
    %236 = vector.extract %235[0, 0, 0] : f32 from vector<1x1x1xf32>
    %cst_80 = arith.constant 2.000000e+00 : f32
    %237 = arith.mulf %cst_80, %236 : f32
    %238 = arith.subf %231, %237 : f32
    %239 = vector.shape_cast %218 : vector<128x1xf32> to vector<1x128x1xf32>
    %cst_81 = arith.constant dense<0.000000e+00> : vector<1xf32>
    %240 = vector.multi_reduction <add>, %239, %cst_81 [1, 2] : vector<1x128x1xf32> to vector<1xf32>
    %241 = vector.shape_cast %240 : vector<1xf32> to vector<1x1x1xf32>
    %242 = vector.extract %241[0, 0, 0] : f32 from vector<1x1x1xf32>
    %243 = tpu.iota {dimensions = array<i32: 0>} : vector<8x128xi32>
    %c0_i32 = arith.constant 0 : i32
    %244 = vector.broadcast %c0_i32 : i32 to vector<8x128xi32>
    %245 = arith.cmpi eq, %243, %244 : vector<8x128xi32>
    %cst_82 = arith.constant 0.000000e+00 : f32
    %246 = vector.broadcast %238 : f32 to vector<8x128xf32>
    %247 = vector.broadcast %cst_82 : f32 to vector<8x128xf32>
    %248 = arith.select %245, %246, %247 : vector<8x128xi1>, vector<8x128xf32>
    %c1_i32_83 = arith.constant 1 : i32
    %249 = vector.broadcast %c1_i32_83 : i32 to vector<8x128xi32>
    %250 = arith.cmpi eq, %243, %249 : vector<8x128xi32>
    %cst_84 = arith.constant 0.000000e+00 : f32
    %251 = vector.broadcast %242 : f32 to vector<8x128xf32>
    %252 = vector.broadcast %cst_84 : f32 to vector<8x128xf32>
    %253 = arith.select %250, %251, %252 : vector<8x128xi1>, vector<8x128xf32>
    %254 = arith.addf %248, %253 : vector<8x128xf32>
    %c0_85 = arith.constant 0 : index
    %c0_86 = arith.constant 0 : index
    %c0_87 = arith.constant 0 : index
    %255 = vector.load %arg6[%c0_85, %c0_86, %c0_87] : memref<1x8x128xf32, #tpu.memory_space<vmem>>, vector<1x8x128xf32>
    %256 = vector.shape_cast %255 : vector<1x8x128xf32> to vector<8x128xf32>
    %257 = vector.shape_cast %254 : vector<8x128xf32> to vector<1x8x128xf32>
    tpu.vector_store %arg6[%c0_85, %c0_86, %c0_87], %257 {strides = array<i32>} : memref<1x8x128xf32, #tpu.memory_space<vmem>>, vector<1x8x128xf32>,
    return
  }
  func.func @transform_0(%arg0: i32) -> (i32, i32, i32) {
    %c0_i32 = arith.constant 0 : i32
    %c0_i32_0 = arith.constant 0 : i32
    %c0_i32_1 = arith.constant 0 : i32
    return %arg0, %c0_i32, %c0_i32_0 : i32, i32, i32
  }
  func.func @transform_1(%arg0: i32) -> (i32, i32, i32) {
    %c2_i32 = arith.constant 2 : i32
    %0 = arith.addi %arg0, %c2_i32 : i32
    %c0_i32 = arith.constant 0 : i32
    %c0_i32_0 = arith.constant 0 : i32
    %c0_i32_1 = arith.constant 0 : i32
    return %0, %c0_i32, %c0_i32_0 : i32, i32, i32
  }
  func.func @transform_2(%arg0: i32) -> (i32, i32, i32) {
    %c0_i32 = arith.constant 0 : i32
    %c0_i32_0 = arith.constant 0 : i32
    %c0_i32_1 = arith.constant 0 : i32
    return %arg0, %c0_i32, %c0_i32_0 : i32, i32, i32
  }
  func.func @transform_3(%arg0: i32) -> (i32, i32, i32) {
    %c0_i32 = arith.constant 0 : i32
    %c0_i32_0 = arith.constant 0 : i32
    %c0_i32_1 = arith.constant 0 : i32
    return %arg0, %c0_i32, %c0_i32_0 : i32, i32, i32
  }
  func.func @transform_4(%arg0: i32) -> (i32, i32, i32) {
    %c0_i32 = arith.constant 0 : i32
    %c0_i32_0 = arith.constant 0 : i32
    %c0_i32_1 = arith.constant 0 : i32
    return %arg0, %c0_i32, %c0_i32_0 : i32, i32, i32
  }
  func.func @transform_5(%arg0: i32) -> (i32, i32, i32) {
    %c0_i32 = arith.constant 0 : i32
    %c0_i32_0 = arith.constant 0 : i32
    %c0_i32_1 = arith.constant 0 : i32
    return %arg0, %c0_i32, %c0_i32_0 : i32, i32, i32
  }
}

</mosaic_0001>

<llo_original>
// kernel: tpu_custom_call.1
$region0: #{tpu_custom_call.1}
  #allocation0 [shape = 'u32[]', space=smem, size = 0x4, offset = 0x4, fixed_abs, tag = 'smem constant byte address 0x4 - core index']
  #allocation1 [shape = 'u32[144,128]{1,0:T(1,128)}', space=vmem, size = 0x12000, scoped, tag = 'internal scratch']
  %s0 = inlined_call_operand.vmem [shape: f32[4,32,256], index: 0, kind: input, shape index: {}]
  %s1 = inlined_call_operand.hbm [shape: f32[4,32,256], index: 1, kind: input, shape index: {}]
  %s2 = inlined_call_operand.vmem [shape: f32[2,4,128], index: 2, kind: input, shape index: {}]
  %s3 = inlined_call_operand.vmem [shape: f32[2,128,4], index: 3, kind: input, shape index: {}]
  %s4 = inlined_call_operand.vmem [shape: f32[2,4,128], index: 4, kind: input, shape index: {}]
  %s5 = inlined_call_operand.hbm [shape: f32[2,8,128], index: 5, kind: output, shape index: {}]
  %s6 = sld [smem:[#allocation0]]
  $region57: #{tpu_custom_call.1} parent=0
    _
  %s8 = ssub.s32 1, %s6
  %s9 = scalar_select 0, %s8, %s6
  $region1: #{tpu_custom_call.1} parent=0
    #allocation2 [shape = 'u8[65536]{0}', space=vmem, size = 0x10000, scoped, tag = 'input window, operand 1']
    #allocation3 [shape = 's32[2]{0}', space=sflag, size = 0x8, scoped, tag = 'scoped memory for tpu_custom_call.1']
    #allocation4 [shape = 's32[2]{0}', space=sflag, size = 0x8, scoped, tag = 'scoped memory for tpu_custom_call.1']
    #allocation5 [shape = 'u8[8192]{0}', space=vmem, size = 0x2000, scoped, tag = 'output window, operand 0']
    %10 = vsyncpa [#allocation3], 0
    %s11 = scalar_lea.sflag [#allocation3], 1
    %12 = vsyncpa %s11, 0
    %13 = vsyncpa [#allocation4], 0
    %s14 = scalar_lea.sflag [#allocation4], 1
    %15 = vsyncpa %s14, 0
    loop: start=0, step=1, limit=4
    $region2: #{tpu_custom_call.1} parent=1 // loop_pre_header
      _
    $region3: #{tpu_custom_call.1} parent=1 // loop_header
      %s17 = sphi 0, %s21
      %p18 = scmp.ge.s32.totalorder %s17, 4
      %s27 = sphi 0, %s29
      %s30 = sphi 0, %s27
      %s31 = sphi 0, %s30
      %s47 = sphi 0, %s31
      %s55 = sphi 0, %s57
      %s58 = sphi 0, %s55
      %s59 = sphi 0, %s58
      %s75 = sphi 0, %s59
      %s81 = sphi 0, %s83
      %s84 = sphi 0, %s81
      %s85 = sphi 0, %s84
      %s101 = sphi 0, %s85
      %s107 = sphi 0, %s109
      %s110 = sphi 0, %s107
      %s111 = sphi 0, %s110
      %s127 = sphi 0, %s111
      %s133 = sphi 0, %s135
      %s136 = sphi 0, %s133
      %s137 = sphi 0, %s136
      %s153 = sphi 0, %s137
      %s159 = sphi 0, %s161
      %s162 = sphi 0, %s159
      %s163 = sphi 0, %s162
      %s179 = sphi 0, %s163
    $region4: #{tpu_custom_call.1} parent=1 // loop_header_branch
      %20 = sbr.rel (%p18) target = $region8
    $region5: #{tpu_custom_call.1} parent=1 // loop_body
      %s22 = ssub.s32 %s17, 1
      %s23 = ssub.s32 %s17, 2
      %s24 = sadd.s32 %s17, 1
      %s25 = ssub.s32 %s17, %s24
      %p26 = scmp.eq.s32.totalorder %s25, 0
      %s28 = sadd.s32 %s27, 1
      %s29 = scalar_select %p26, %s27, %s28
      %p32 = pneg %p26
      %p33 = scmp.eq.s32.totalorder %s17, 1
      %p34 = por %p32, %p33
      %p35 = scmp.ne.s32.totalorder %s27, %s30
      %p36 = scmp.eq.s32.totalorder %s17, 0
      %p37 = por %p35, %p36
      %p38 = scmp.ne.s32.totalorder %s27, %s30
      %p39 = scmp.eq.s32.totalorder %s22, 1
      %p40 = por %p38, %p39
      %p41 = scmp.ne.s32.totalorder %s30, %s31
      %p42 = scmp.eq.s32.totalorder %s22, 0
      %p43 = por %p41, %p42
      %p44 = scmp.ne.s32.totalorder %s30, %s31
      %p45 = scmp.eq.s32.totalorder %s23, 1
      %p46 = por %p44, %p45
      %p48 = scmp.ne.s32.totalorder %s31, %s47
      %p49 = scmp.eq.s32.totalorder %s23, 0
      %p50 = por %p48, %p49
      %s51 = sadd.s32 %s17, 2
      %s52 = sadd.s32 %s24, 2
      %s53 = ssub.s32 %s51, %s52
      %p54 = scmp.eq.s32.totalorder %s53, 0
      %s56 = sadd.s32 %s55, 1
      %s57 = scalar_select %p54, %s55, %s56
      %p60 = pneg %p54
      %p61 = scmp.eq.s32.totalorder %s17, 1
      %p62 = por %p60, %p61
      %p63 = scmp.ne.s32.totalorder %s55, %s58
      %p64 = scmp.eq.s32.totalorder %s17, 0
      %p65 = por %p63, %p64
      %p66 = scmp.ne.s32.totalorder %s55, %s58
      %p67 = scmp.eq.s32.totalorder %s22, 1
      %p68 = por %p66, %p67
      %p69 = scmp.ne.s32.totalorder %s58, %s59
      %p70 = scmp.eq.s32.totalorder %s22, 0
      %p71 = por %p69, %p70
      %p72 = scmp.ne.s32.totalorder %s58, %s59
      %p73 = scmp.eq.s32.totalorder %s23, 1
      %p74 = por %p72, %p73
      %p76 = scmp.ne.s32.totalorder %s59, %s75
      %p77 = scmp.eq.s32.totalorder %s23, 0
      %p78 = por %p76, %p77
      %s79 = ssub.s32 %s17, %s24
      %p80 = scmp.eq.s32.totalorder %s79, 0
      %s82 = sadd.s32 %s81, 1
      %s83 = scalar_select %p80, %s81, %s82
      %p86 = pneg %p80
      %p87 = scmp.eq.s32.totalorder %s17, 1
      %p88 = por %p86, %p87
      %p89 = scmp.ne.s32.totalorder %s81, %s84
      %p90 = scmp.eq.s32.totalorder %s17, 0
      %p91 = por %p89, %p90
      %p92 = scmp.ne.s32.totalorder %s81, %s84
      %p93 = scmp.eq.s32.totalorder %s22, 1
      %p94 = por %p92, %p93
      %p95 = scmp.ne.s32.totalorder %s84, %s85
      %p96 = scmp.eq.s32.totalorder %s22, 0
      %p97 = por %p95, %p96
      %p98 = scmp.ne.s32.totalorder %s84, %s85
      %p99 = scmp.eq.s32.totalorder %s23, 1
      %p100 = por %p98, %p99
      %p102 = scmp.ne.s32.totalorder %s85, %s101
      %p103 = scmp.eq.s32.totalorder %s23, 0
      %p104 = por %p102, %p103
      %s105 = ssub.s32 %s17, %s24
      %p106 = scmp.eq.s32.totalorder %s105, 0
      %s108 = sadd.s32 %s107, 1
      %s109 = scalar_select %p106, %s107, %s108
      %p112 = pneg %p106
      %p113 = scmp.eq.s32.totalorder %s17, 1
      %p114 = por %p112, %p113
      %p115 = scmp.ne.s32.totalorder %s107, %s110
      %p116 = scmp.eq.s32.totalorder %s17, 0
      %p117 = por %p115, %p116
      %p118 = scmp.ne.s32.totalorder %s107, %s110
      %p119 = scmp.eq.s32.totalorder %s22, 1
      %p120 = por %p118, %p119
      %p121 = scmp.ne.s32.totalorder %s110, %s111
      %p122 = scmp.eq.s32.totalorder %s22, 0
      %p123 = por %p121, %p122
      %p124 = scmp.ne.s32.totalorder %s110, %s111
      %p125 = scmp.eq.s32.totalorder %s23, 1
      %p126 = por %p124, %p125
      %p128 = scmp.ne.s32.totalorder %s111, %s127
      %p129 = scmp.eq.s32.totalorder %s23, 0
      %p130 = por %p128, %p129
      %s131 = ssub.s32 %s17, %s24
      %p132 = scmp.eq.s32.totalorder %s131, 0
      %s134 = sadd.s32 %s133, 1
      %s135 = scalar_select %p132, %s133, %s134
      %p138 = pneg %p132
      %p139 = scmp.eq.s32.totalorder %s17, 1
      %p140 = por %p138, %p139
      %p141 = scmp.ne.s32.totalorder %s133, %s136
      %p142 = scmp.eq.s32.totalorder %s17, 0
      %p143 = por %p141, %p142
      %p144 = scmp.ne.s32.totalorder %s133, %s136
      %p145 = scmp.eq.s32.totalorder %s22, 1
      %p146 = por %p144, %p145
      %p147 = scmp.ne.s32.totalorder %s136, %s137
      %p148 = scmp.eq.s32.totalorder %s22, 0
      %p149 = por %p147, %p148
      %p150 = scmp.ne.s32.totalorder %s136, %s137
      %p151 = scmp.eq.s32.totalorder %s23, 1
      %p152 = por %p150, %p151
      %p154 = scmp.ne.s32.totalorder %s137, %s153
      %p155 = scmp.eq.s32.totalorder %s23, 0
      %p156 = por %p154, %p155
      %s157 = ssub.s32 %s17, %s24
      %p158 = scmp.eq.s32.totalorder %s157, 0
      %s160 = sadd.s32 %s159, 1
      %s161 = scalar_select %p158, %s159, %s160
      %p164 = pneg %p158
      %p165 = scmp.eq.s32.totalorder %s17, 1
      %p166 = por %p164, %p165
      %p167 = scmp.ne.s32.totalorder %s159, %s162
      %p168 = scmp.eq.s32.totalorder %s17, 0
      %p169 = por %p167, %p168
      %p170 = scmp.ne.s32.totalorder %s159, %s162
      %p171 = scmp.eq.s32.totalorder %s22, 1
      %p172 = por %p170, %p171
      %p173 = scmp.ne.s32.totalorder %s162, %s163
      %p174 = scmp.eq.s32.totalorder %s22, 0
      %p175 = por %p173, %p174
      %p176 = scmp.ne.s32.totalorder %s162, %s163
      %p177 = scmp.eq.s32.totalorder %s23, 1
      %p178 = por %p176, %p177
      %p180 = scmp.ne.s32.totalorder %s163, %s179
      %p181 = scmp.eq.s32.totalorder %s23, 0
      %p182 = por %p180, %p181
      %p183 = scmp.le.s32.totalorder 1, %s17
      %p184 = scmp.lt.s32.totalorder %s17, 3
      %p185 = pnand %p183, %p184
      %p186 = pneg %p185
      // Predicated region
      $region9: #{tpu_custom_call.1} parent=5 // pred_check
        _
      $region10: #{tpu_custom_call.1} parent=5 // pred_check_branch
        %188 = sbr.rel (%p185) target = $region12
      $region11: #{tpu_custom_call.1} parent=5 // pred_region
        %s189 = ssub.s32 %s17, 1
      $region12: #{tpu_custom_call.1} parent=5 // pred_fallthru
        _
      %p190 = scmp.lt.s32.totalorder %s17, 2
      // Predicated region
      $region13: #{tpu_custom_call.1} parent=5 // pred_check
        %p191 = pneg %p190
      $region14: #{tpu_custom_call.1} parent=5 // pred_check_branch
        %193 = sbr.rel (%p191) target = $region16
      $region15: #{tpu_custom_call.1} parent=5 // pred_region
        // Predicated region
        $region17: #{tpu_custom_call.1} parent=15 // pred_check
          %p194 = pneg %p37
        $region18: #{tpu_custom_call.1} parent=15 // pred_check_branch
          %196 = sbr.rel (%p194) target = $region20
        $region19: #{tpu_custom_call.1} parent=15 // pred_region
          %p197 = scmp.lt.s32.totalorder %s17, 3
          %s198 = scalar_select %p197, %s17, 3
          %s199 = smul.addr %s198, 8
          %s200 = smul.addr %s199, 8
          %s201 = scalar_lea.vmem %s0, %s200
        $region20: #{tpu_custom_call.1} parent=15 // pred_fallthru
          _
        // Predicated region
        $region21: #{tpu_custom_call.1} parent=15 // pred_check
          %p202 = pneg %p65
        $region22: #{tpu_custom_call.1} parent=15 // pred_check_branch
          %204 = sbr.rel (%p202) target = $region24
        $region23: #{tpu_custom_call.1} parent=15 // pred_region
          %s205 = sand.u32 %s55, 1
          %s206 = scalar_lea.sflag [#allocation3], %s205
          %s207 = sand.u32 %s55, 1
          %s208 = smul.addr %s207, 64
          %s209 = scalar_lea.vmem [#allocation2], %s208
          %s210 = sadd.s32 %s17, 2
          %s212 = ssub.s32 1024, 1024
          %213 = vsyncadd %s206, %s212
          %s214 = smul.addr %s210, 8
          %s215 = smul.addr %s214, 128
          %s216 = scalar_lea.hbm %s1, %s215
          %s217 = sshll.u32 %s209, 4
          %s218 = int_to_ptr.vmem [resolvable:$true] %s217
          %223 = dma.hbm_to_vmem [thread:$0]  %s216, 1024, %s218, %s206, 256, 256, 16
        $region24: #{tpu_custom_call.1} parent=15 // pred_fallthru
          _
        // Predicated region
        $region25: #{tpu_custom_call.1} parent=15 // pred_check
          %p224 = pneg %p91
        $region26: #{tpu_custom_call.1} parent=15 // pred_check_branch
          %226 = sbr.rel (%p224) target = $region28
        $region27: #{tpu_custom_call.1} parent=15 // pred_region
          %p227 = scmp.lt.s32.totalorder %s17, 1
          %s228 = scalar_select %p227, %s17, 1
          %s229 = smul.addr %s228, 4
          %s230 = scalar_lea.vmem %s2, %s229
        $region28: #{tpu_custom_call.1} parent=15 // pred_fallthru
          _
        // Predicated region
        $region29: #{tpu_custom_call.1} parent=15 // pred_check
          %p231 = pneg %p117
        $region30: #{tpu_custom_call.1} parent=15 // pred_check_branch
          %233 = sbr.rel (%p231) target = $region32
        $region31: #{tpu_custom_call.1} parent=15 // pred_region
          %p234 = scmp.lt.s32.totalorder %s17, 1
          %s235 = scalar_select %p234, %s17, 1
          %s236 = smul.addr %s235, 16
          %s237 = smul.addr %s236, 8
          %s238 = scalar_lea.vmem %s3, %s237
        $region32: #{tpu_custom_call.1} parent=15 // pred_fallthru
          _
        // Predicated region
        $region33: #{tpu_custom_call.1} parent=15 // pred_check
          %p239 = pneg %p143
        $region34: #{tpu_custom_call.1} parent=15 // pred_check_branch
          %241 = sbr.rel (%p239) target = $region36
        $region35: #{tpu_custom_call.1} parent=15 // pred_region
          %p242 = scmp.lt.s32.totalorder %s17, 1
          %s243 = scalar_select %p242, %s17, 1
          %s244 = smul.addr %s243, 4
          %s245 = scalar_lea.vmem %s4, %s244
        $region36: #{tpu_custom_call.1} parent=15 // pred_fallthru
          _
      $region16: #{tpu_custom_call.1} parent=5 // pred_fallthru
        _
      %p246 = scmp.le.s32.totalorder 1, %s17
      %p247 = scmp.lt.s32.totalorder %s17, 3
      %p248 = pnand %p246, %p247
      %p249 = pneg %p248
      // Predicated region
      $region37: #{tpu_custom_call.1} parent=5 // pred_check
        _
      $region38: #{tpu_custom_call.1} parent=5 // pred_check_branch
        %251 = sbr.rel (%p248) target = $region40
      $region39: #{tpu_custom_call.1} parent=5 // pred_region
        %s252 = ssub.s32 %s17, 1
        %s253 = sand.u32 %s58, 1
        %s254 = scalar_lea.sflag [#allocation3], %s253
        %s255 = sand.u32 %s58, 1
        %s256 = smul.addr %s255, 64
        %s257 = scalar_lea.vmem [#allocation2], %s256
        // Predicated region
        $region41: #{tpu_custom_call.1} parent=39 // pred_check
          %p258 = pneg %p71
        $region42: #{tpu_custom_call.1} parent=39 // pred_check_branch
          %260 = sbr.rel (%p258) target = $region44
        $region43: #{tpu_custom_call.1} parent=39 // pred_region
          %261 = dma.done %s254, 1024
        $region44: #{tpu_custom_call.1} parent=39 // pred_fallthru
          _
        %p262 = scmp.lt.s32.totalorder %s22, 3
        %s263 = scalar_select %p262, %s22, 3
        %s264 = smul.addr %s263, 8
        %s265 = smul.addr %s264, 8
        %s266 = scalar_lea.vmem %s0, %s265
        %p267 = pneg %p43
        %p268 = pneg %p40
        %s269 = sand.u32 %s58, 1
        %s270 = scalar_lea.sflag [#allocation3], %s269
        %s271 = sand.u32 %s58, 1
        %s272 = smul.addr %s271, 64
        %s273 = scalar_lea.vmem [#allocation2], %s272
        %p274 = pneg %p71
        %p275 = pneg %p68
        %p276 = scmp.lt.s32.totalorder %s22, 1
        %s277 = scalar_select %p276, %s22, 1
        %s278 = smul.addr %s277, 4
        %s279 = scalar_lea.vmem %s2, %s278
        %p280 = pneg %p97
        %p281 = pneg %p94
        %p282 = scmp.lt.s32.totalorder %s22, 1
        %s283 = scalar_select %p282, %s22, 1
        %s284 = smul.addr %s283, 16
        %s285 = smul.addr %s284, 8
        %s286 = scalar_lea.vmem %s3, %s285
        %p287 = pneg %p123
        %p288 = pneg %p120
        %p289 = scmp.lt.s32.totalorder %s22, 1
        %s290 = scalar_select %p289, %s22, 1
        %s291 = smul.addr %s290, 4
        %s292 = scalar_lea.vmem %s4, %s291
        %p293 = pneg %p149
        %p294 = pneg %p146
        %p295 = pneg %p175
        %p296 = pneg %p172
        %s297 = sand.u32 %s162, 1
        %s298 = scalar_lea.sflag [#allocation4], %s297
        %s299 = sand.u32 %s162, 1
        %s300 = smul.addr %s299, 8
        %s301 = scalar_lea.vmem [#allocation5], %s300
        %p302 = scmp.lt.s32.totalorder %s22, 3
        %s303 = scalar_select %p302, %s22, 3
        %s304 = smul.addr %s303, 8
        %s305 = smul.addr %s304, 8
        %s306 = scalar_lea.vmem %s0, %s305
        %s307 = sadd.s32 %s22, 2
        %p308 = scmp.lt.s32.totalorder %s22, 1
        %s309 = scalar_select %p308, %s22, 1
        %s310 = smul.addr %s309, 4
        %s311 = scalar_lea.vmem %s2, %s310
        %p312 = scmp.lt.s32.totalorder %s22, 1
        %s313 = scalar_select %p312, %s22, 1
        %s314 = smul.addr %s313, 16
        %s315 = smul.addr %s314, 8
        %s316 = scalar_lea.vmem %s3, %s315
        %p317 = scmp.lt.s32.totalorder %s22, 1
        %s318 = scalar_select %p317, %s22, 1
        %s319 = smul.addr %s318, 4
        %s320 = scalar_lea.vmem %s4, %s319
        %v322 = vld [vmem:[%s311] sm:$0x1]
        %v323 = vld [vmem:[%s311 + $0x1] sm:$0x1]
        %v324 = vadd.f32 %v322, 1.0
        %v325 = vmul.f32 %v324, 8.0
        %v326 = vsub.f32 %v325, 0.5
        %v327 = vadd.f32 %v323, 1.0
        %v328 = vmul.f32 %v327, 8.0
        %v329 = vsub.f32 %v328, 0.5
        %v330 = vfloor.f32 %v326
        %v331 = vfloor.f32 %v329
        %v332 = vcvt.f32.s32.to.zero.pseudo %v330
        %v333 = vcvt.f32.s32.to.zero.pseudo %v331
        %v334 = vsub.f32 %v326, %v330
        %v335 = vsub.f32 1.0, %v334
        %v336 = vsub.f32 %v329, %v331
        %v337 = vsub.f32 1.0, %v336
        %v338 = vlaneseq
        %v339 = vshrl.u32 %v338, 7
        %v340 = vadd.s32 %v339, 8
        %v341 = vlaneseq
        %v342 = vshrl.u32 %v341, 7
        %v343 = vsub.s32 0, %v342
        %v344 = vrot.slane %v333, %v343
        %vm345 = vcmp.eq.s32.totalorder %v339, %v344
        %vm346 = vcmp.eq.s32.totalorder %v340, %v344
        %v347 = vlaneseq
        %v348 = vshrl.u32 %v347, 7
        %v349 = vsub.s32 0, %v348
        %v350 = vrot.slane %v337, %v349
        %v351 = vsel %vm345, %v350, 0.0
        %v352 = vsel %vm346, %v350, 0.0
        %v353 = vadd.s32 %v333, 1
        %v354 = vlaneseq
        %v355 = vshrl.u32 %v354, 7
        %v356 = vsub.s32 0, %v355
        %v357 = vrot.slane %v353, %v356
        %vm358 = vcmp.eq.s32.totalorder %v339, %v357
        %vm359 = vcmp.eq.s32.totalorder %v340, %v357
        %v360 = vlaneseq
        %v361 = vshrl.u32 %v360, 7
        %v362 = vsub.s32 0, %v361
        %v363 = vrot.slane %v336, %v362
        %v364 = vsel %vm358, %v363, 0.0
        %v365 = vsel %vm359, %v363, 0.0
        %v366 = vadd.f32 %v351, %v364
        %v367 = vadd.f32 %v352, %v365
        %v368 = vlaneseq
        %v369 = vshrl.u32 %v368, 7
        %v370 = vsub.s32 0, %v369
        %v371 = vrot.slane %v332, %v370
        %vm372 = vcmp.eq.s32.totalorder %v339, %v371
        %vm373 = vcmp.eq.s32.totalorder %v340, %v371
        %v374 = vlaneseq
        %v375 = vshrl.u32 %v374, 7
        %v376 = vsub.s32 0, %v375
        %v377 = vrot.slane %v335, %v376
        %v378 = vsel %vm372, %v377, 0.0
        %v379 = vsel %vm373, %v377, 0.0
        %v380 = vadd.s32 %v332, 1
        %v381 = vlaneseq
        %v382 = vshrl.u32 %v381, 7
        %v383 = vsub.s32 0, %v382
        %v384 = vrot.slane %v380, %v383
        %vm385 = vcmp.eq.s32.totalorder %v339, %v384
        %vm386 = vcmp.eq.s32.totalorder %v340, %v384
        %v387 = vlaneseq
        %v388 = vshrl.u32 %v387, 7
        %v389 = vsub.s32 0, %v388
        %v390 = vrot.slane %v334, %v389
        %v391 = vsel %vm385, %v390, 0.0
        %v392 = vsel %vm386, %v390, 0.0
        %v393 = vadd.f32 %v378, %v391
        %v394 = vadd.f32 %v379, %v392
        %v397 = vcombine.high %v366, %v366
        %v399 = vunpack.c.l.s4 1966171168
        %v400 = vunpack.c.0.s8 %v399
        %v401 = vlaneseq
        %v402 = vshrl.u32 %v401, 7
        %v403 = vsub.s32 %v400, %v402
        %v404 = vrot.slane %v366, %v403
        %v406 = vunpack.c.l.s4 1966171168
        %v407 = vunpack.c.0.s8 %v406
        %v408 = vlaneseq
        %v409 = vshrl.u32 %v408, 7
        %v410 = vsub.s32 %v407, %v409
        %v411 = vrot.slane %v397, %v410
        %v412 = vcombine.high %v404, %v404
        %v413 = vcombine.high %v411, %v411
        %v415 = vunpack.c.l.s4 1966171168
        %v416 = vunpack.c.0.s8 %v415
        %v417 = vlaneseq
        %v418 = vshrl.u32 %v417, 7
        %v419 = vsub.s32 %v416, %v418
        %v420 = vrot.slane %v404, %v419
        %v422 = vunpack.c.l.s4 1966171168
        %v423 = vunpack.c.0.s8 %v422
        %v424 = vlaneseq
        %v425 = vshrl.u32 %v424, 7
        %v426 = vsub.s32 %v423, %v425
        %v427 = vrot.slane %v411, %v426
        %v429 = vunpack.c.l.s4 1966171168
        %v430 = vunpack.c.0.s8 %v429
        %v431 = vlaneseq
        %v432 = vshrl.u32 %v431, 7
        %v433 = vsub.s32 %v430, %v432
        %v434 = vrot.slane %v412, %v433
        %v436 = vunpack.c.l.s4 1966171168
        %v437 = vunpack.c.0.s8 %v436
        %v438 = vlaneseq
        %v439 = vshrl.u32 %v438, 7
        %v440 = vsub.s32 %v437, %v439
        %v441 = vrot.slane %v413, %v440
        %v442 = vcombine.high %v420, %v420
        %v443 = vcombine.high %v427, %v427
        %v444 = vcombine.high %v434, %v434
        %v445 = vcombine.high %v441, %v441
        %v446 = vcombine.high %v367, %v367
        %v448 = vunpack.c.l.s4 1966171168
        %v449 = vunpack.c.0.s8 %v448
        %v450 = vlaneseq
        %v451 = vshrl.u32 %v450, 7
        %v452 = vsub.s32 %v449, %v451
        %v453 = vrot.slane %v367, %v452
        %v455 = vunpack.c.l.s4 1966171168
        %v456 = vunpack.c.0.s8 %v455
        %v457 = vlaneseq
        %v458 = vshrl.u32 %v457, 7
        %v459 = vsub.s32 %v456, %v458
        %v460 = vrot.slane %v446, %v459
        %v461 = vcombine.high %v453, %v453
        %v462 = vcombine.high %v460, %v460
        %v464 = vunpack.c.l.s4 1966171168
        %v465 = vunpack.c.0.s8 %v464
        %v466 = vlaneseq
        %v467 = vshrl.u32 %v466, 7
        %v468 = vsub.s32 %v465, %v467
        %v469 = vrot.slane %v453, %v468
        %v471 = vunpack.c.l.s4 1966171168
        %v472 = vunpack.c.0.s8 %v471
        %v473 = vlaneseq
        %v474 = vshrl.u32 %v473, 7
        %v475 = vsub.s32 %v472, %v474
        %v476 = vrot.slane %v460, %v475
        %v478 = vunpack.c.l.s4 1966171168
        %v479 = vunpack.c.0.s8 %v478
        %v480 = vlaneseq
        %v481 = vshrl.u32 %v480, 7
        %v482 = vsub.s32 %v479, %v481
        %v483 = vrot.slane %v461, %v482
        %v485 = vunpack.c.l.s4 1966171168
        %v486 = vunpack.c.0.s8 %v485
        %v487 = vlaneseq
        %v488 = vshrl.u32 %v487, 7
        %v489 = vsub.s32 %v486, %v488
        %v490 = vrot.slane %v462, %v489
        %v491 = vcombine.high %v469, %v469
        %v492 = vcombine.high %v476, %v476
        %v493 = vcombine.high %v483, %v483
        %v494 = vcombine.high %v490, %v490
        %v495 = vlaneseq
        %v496 = vshrl.u32 %v495, 7
        %v497 = vsub.s32 0, %v496
        %v498 = vrot.slane %v420, %v497
        %v499 = vlaneseq
        %v500 = vshrl.u32 %v499, 7
        %v501 = vsub.s32 0, %v500
        %v502 = vrot.slane %v434, %v501
        %v503 = vlaneseq
        %v504 = vshrl.u32 %v503, 7
        %v505 = vsub.s32 0, %v504
        %v506 = vrot.slane %v442, %v505
        %v507 = vlaneseq
        %v508 = vshrl.u32 %v507, 7
        %v509 = vsub.s32 0, %v508
        %v510 = vrot.slane %v444, %v509
        %v511 = vlaneseq
        %v512 = vshrl.u32 %v511, 7
        %v513 = vsub.s32 0, %v512
        %v514 = vrot.slane %v427, %v513
        %v515 = vlaneseq
        %v516 = vshrl.u32 %v515, 7
        %v517 = vsub.s32 0, %v516
        %v518 = vrot.slane %v441, %v517
        %v519 = vlaneseq
        %v520 = vshrl.u32 %v519, 7
        %v521 = vsub.s32 0, %v520
        %v522 = vrot.slane %v443, %v521
        %v523 = vlaneseq
        %v524 = vshrl.u32 %v523, 7
        %v525 = vsub.s32 0, %v524
        %v526 = vrot.slane %v445, %v525
        %v527 = vlaneseq
        %v528 = vshrl.u32 %v527, 7
        %v529 = vsub.s32 0, %v528
        %v530 = vrot.slane %v469, %v529
        %v531 = vlaneseq
        %v532 = vshrl.u32 %v531, 7
        %v533 = vsub.s32 0, %v532
        %v534 = vrot.slane %v483, %v533
        %v535 = vlaneseq
        %v536 = vshrl.u32 %v535, 7
        %v537 = vsub.s32 0, %v536
        %v538 = vrot.slane %v491, %v537
        %v539 = vlaneseq
        %v540 = vshrl.u32 %v539, 7
        %v541 = vsub.s32 0, %v540
        %v542 = vrot.slane %v493, %v541
        %v543 = vlaneseq
        %v544 = vshrl.u32 %v543, 7
        %v545 = vsub.s32 0, %v544
        %v546 = vrot.slane %v476, %v545
        %v547 = vlaneseq
        %v548 = vshrl.u32 %v547, 7
        %v549 = vsub.s32 0, %v548
        %v550 = vrot.slane %v490, %v549
        %v551 = vlaneseq
        %v552 = vshrl.u32 %v551, 7
        %v553 = vsub.s32 0, %v552
        %v554 = vrot.slane %v492, %v553
        %v555 = vlaneseq
        %v556 = vshrl.u32 %v555, 7
        %v557 = vsub.s32 0, %v556
        %v558 = vrot.slane %v494, %v557
        %v575 = vmul.f32 %v498, %v393
        %v576 = vmul.f32 %v498, %v394
        %v577 = vmul.f32 %v502, %v393
        %v578 = vmul.f32 %v502, %v394
        %v579 = vmul.f32 %v506, %v393
        %v580 = vmul.f32 %v506, %v394
        %v581 = vmul.f32 %v510, %v393
        %v582 = vmul.f32 %v510, %v394
        %v583 = vmul.f32 %v514, %v393
        %v584 = vmul.f32 %v514, %v394
        %v585 = vmul.f32 %v518, %v393
        %v586 = vmul.f32 %v518, %v394
        %v587 = vmul.f32 %v522, %v393
        %v588 = vmul.f32 %v522, %v394
        %v589 = vmul.f32 %v526, %v393
        %v590 = vmul.f32 %v526, %v394
        %v591 = vmul.f32 %v530, %v393
        %v592 = vmul.f32 %v530, %v394
        %v593 = vmul.f32 %v534, %v393
        %v594 = vmul.f32 %v534, %v394
        %v595 = vmul.f32 %v538, %v393
        %v596 = vmul.f32 %v538, %v394
        %v597 = vmul.f32 %v542, %v393
        %v598 = vmul.f32 %v542, %v394
        %v599 = vmul.f32 %v546, %v393
        %v600 = vmul.f32 %v546, %v394
        %v601 = vmul.f32 %v550, %v393
        %v602 = vmul.f32 %v550, %v394
        %v603 = vmul.f32 %v554, %v393
        %v604 = vmul.f32 %v554, %v394
        %v605 = vmul.f32 %v558, %v393
        %v606 = vmul.f32 %v558, %v394
        %v607 = vld [vmem:[%s306] sm:$0xff]
        %v608 = vld [vmem:[%s306 + $0x8] sm:$0xff]
        %v609 = vld [vmem:[%s306 + $0x10] sm:$0xff]
        %v610 = vld [vmem:[%s306 + $0x18] sm:$0xff]
        %v611 = vld [vmem:[%s306 + $0x20] sm:$0xff]
        %v612 = vld [vmem:[%s306 + $0x28] sm:$0xff]
        %v613 = vld [vmem:[%s306 + $0x30] sm:$0xff]
        %v614 = vld [vmem:[%s306 + $0x38] sm:$0xff]
        %v615 = vpack.c.bf16 %v609, %v607
        %v616 = vpack.c.bf16 %v610, %v608
        %v617 = vpack.c.bf16 %v613, %v611
        %v618 = vpack.c.bf16 %v614, %v612
        %v619 = vpack.c.bf16 %v576, %v575
        %v620 = vpack.c.bf16 %v578, %v577
        %v621 = vpack.c.bf16 %v580, %v579
        %v622 = vpack.c.bf16 %v582, %v581
        %v623 = vpack.c.bf16 %v584, %v583
        %v624 = vpack.c.bf16 %v586, %v585
        %v625 = vpack.c.bf16 %v588, %v587
        %v626 = vpack.c.bf16 %v590, %v589
        %v627 = vpack.c.bf16 %v592, %v591
        %v628 = vpack.c.bf16 %v594, %v593
        %v629 = vpack.c.bf16 %v596, %v595
        %v630 = vpack.c.bf16 %v598, %v597
        %v631 = vpack.c.bf16 %v600, %v599
        %v632 = vpack.c.bf16 %v602, %v601
        %v633 = vpack.c.bf16 %v604, %v603
        %v634 = vpack.c.bf16 %v606, %v605
        %635 = vmatprep.subr.bf16.mxu0 0
        %636 = vmatpush1.bf16.msra.mxu0 %v619
        %637 = vmatprep.subr.bf16.mxu0 0
        %638 = vmatpush1.bf16.msra.mxu0 %v620
        %639 = vmatprep.subr.bf16.mxu0 0
        %640 = vmatpush1.bf16.msra.mxu0 %v621
        %641 = vmatprep.subr.bf16.mxu0 0
        %642 = vmatpush1.bf16.msra.mxu0 %v622
        %643 = vmatprep.subr.bf16.mxu0 0
        %644 = vmatpush1.bf16.msra.mxu0 %v623
        %645 = vmatprep.subr.bf16.mxu0 0
        %646 = vmatpush1.bf16.msra.mxu0 %v624
        %647 = vmatprep.subr.bf16.mxu0 0
        %648 = vmatpush1.bf16.msra.mxu0 %v625
        %649 = vmatprep.subr.bf16.mxu0 0
        %650 = vmatpush1.bf16.msra.mxu0 %v626
        %651 = vmatprep.subr.bf16.mxu0 0
        %652 = vmatpush1.bf16.msra.mxu0 %v627
        %653 = vmatprep.subr.bf16.mxu0 0
        %654 = vmatpush1.bf16.msra.mxu0 %v628
        %655 = vmatprep.subr.bf16.mxu0 0
        %656 = vmatpush1.bf16.msra.mxu0 %v629
        %657 = vmatprep.subr.bf16.mxu0 0
        %658 = vmatpush1.bf16.msra.mxu0 %v630
        %659 = vmatprep.subr.bf16.mxu0 0
        %660 = vmatpush1.bf16.msra.mxu0 %v631
        %661 = vmatprep.subr.bf16.mxu0 0
        %662 = vmatpush1.bf16.msra.mxu0 %v632
        %663 = vmatprep.subr.bf16.mxu0 0
        %664 = vmatpush1.bf16.msra.mxu0 %v633
        %665 = vmatprep.subr.bf16.mxu0 0
        %666 = vmatpush1.bf16.msra.mxu0 %v634
        %667 = vmatprep.mubr.bf16.mxu0 %v616
        %668 = vmatmul.mubr.bf16.gmra.mrb[0].mxu0 %v615
        %v669 = vpop.f32.mrb[0].mxu0
        %v670 = vadd.f32 0.0, %v669
        %v671 = vpop.f32.mrb[0].mxu0
        %v672 = vpop.f32.mrb[0].mxu0
        %v673 = vadd.f32 0.0, %v672
        %v674 = vpop.f32.mrb[0].mxu0
        %675 = vmatprep.mubr.bf16.mxu0 %v618
        %676 = vmatmul.mubr.bf16.gmra.mrb[0].mxu0 %v617
        %v677 = vpop.f32.mrb[0].mxu0
        %v678 = vadd.f32 0.0, %v677
        %v679 = vpop.f32.mrb[0].mxu0
        %v680 = vpop.f32.mrb[0].mxu0
        %v681 = vadd.f32 0.0, %v680
        %v682 = vpop.f32.mrb[0].mxu0
        %683 = vdwg.mxu0
        %v684 = vld [vmem:[%s311 + $0x2] sm:$0x1]
        %v685 = vld [vmem:[%s311 + $0x3] sm:$0x1]
        %v686 = vadd.f32 %v684, 1.0
        %v687 = vmul.f32 %v686, 8.0
        %v688 = vsub.f32 %v687, 0.5
        %v689 = vadd.f32 %v685, 1.0
        %v690 = vmul.f32 %v689, 8.0
        %v691 = vsub.f32 %v690, 0.5
        %v692 = vfloor.f32 %v688
        %v693 = vfloor.f32 %v691
        %v694 = vcvt.f32.s32.to.zero.pseudo %v692
        %v695 = vcvt.f32.s32.to.zero.pseudo %v693
        %v696 = vsub.f32 %v688, %v692
        %v697 = vsub.f32 1.0, %v696
        %v698 = vsub.f32 %v691, %v693
        %v699 = vsub.f32 1.0, %v698
        %v700 = vlaneseq
        %v701 = vshrl.u32 %v700, 7
        %v702 = vsub.s32 0, %v701
        %v703 = vrot.slane %v695, %v702
        %vm704 = vcmp.eq.s32.totalorder %v339, %v703
        %vm705 = vcmp.eq.s32.totalorder %v340, %v703
        %v706 = vlaneseq
        %v707 = vshrl.u32 %v706, 7
        %v708 = vsub.s32 0, %v707
        %v709 = vrot.slane %v699, %v708
        %v710 = vsel %vm704, %v709, 0.0
        %v711 = vsel %vm705, %v709, 0.0
        %v712 = vadd.s32 %v695, 1
        %v713 = vlaneseq
        %v714 = vshrl.u32 %v713, 7
        %v715 = vsub.s32 0, %v714
        %v716 = vrot.slane %v712, %v715
        %vm717 = vcmp.eq.s32.totalorder %v339, %v716
        %vm718 = vcmp.eq.s32.totalorder %v340, %v716
        %v719 = vlaneseq
        %v720 = vshrl.u32 %v719, 7
        %v721 = vsub.s32 0, %v720
        %v722 = vrot.slane %v698, %v721
        %v723 = vsel %vm717, %v722, 0.0
        %v724 = vsel %vm718, %v722, 0.0
        %v725 = vadd.f32 %v710, %v723
        %v726 = vadd.f32 %v711, %v724
        %v727 = vlaneseq
        %v728 = vshrl.u32 %v727, 7
        %v729 = vsub.s32 0, %v728
        %v730 = vrot.slane %v694, %v729
        %vm731 = vcmp.eq.s32.totalorder %v339, %v730
        %vm732 = vcmp.eq.s32.totalorder %v340, %v730
        %v733 = vlaneseq
        %v734 = vshrl.u32 %v733, 7
        %v735 = vsub.s32 0, %v734
        %v736 = vrot.slane %v697, %v735
        %v737 = vsel %vm731, %v736, 0.0
        %v738 = vsel %vm732, %v736, 0.0
        %v739 = vadd.s32 %v694, 1
        %v740 = vlaneseq
        %v741 = vshrl.u32 %v740, 7
        %v742 = vsub.s32 0, %v741
        %v743 = vrot.slane %v739, %v742
        %vm744 = vcmp.eq.s32.totalorder %v339, %v743
        %vm745 = vcmp.eq.s32.totalorder %v340, %v743
        %v746 = vlaneseq
        %v747 = vshrl.u32 %v746, 7
        %v748 = vsub.s32 0, %v747
        %v749 = vrot.slane %v696, %v748
        %v750 = vsel %vm744, %v749, 0.0
        %v751 = vsel %vm745, %v749, 0.0
        %v752 = vadd.f32 %v737, %v750
        %v753 = vadd.f32 %v738, %v751
        %v756 = vcombine.high %v725, %v725
        %v758 = vunpack.c.l.s4 1966171168
        %v759 = vunpack.c.0.s8 %v758
        %v760 = vlaneseq
        %v761 = vshrl.u32 %v760, 7
        %v762 = vsub.s32 %v759, %v761
        %v763 = vrot.slane %v725, %v762
        %v765 = vunpack.c.l.s4 1966171168
        %v766 = vunpack.c.0.s8 %v765
        %v767 = vlaneseq
        %v768 = vshrl.u32 %v767, 7
        %v769 = vsub.s32 %v766, %v768
        %v770 = vrot.slane %v756, %v769
        %v771 = vcombine.high %v763, %v763
        %v772 = vcombine.high %v770, %v770
        %v774 = vunpack.c.l.s4 1966171168
        %v775 = vunpack.c.0.s8 %v774
        %v776 = vlaneseq
        %v777 = vshrl.u32 %v776, 7
        %v778 = vsub.s32 %v775, %v777
        %v779 = vrot.slane %v763, %v778
        %v781 = vunpack.c.l.s4 1966171168
        %v782 = vunpack.c.0.s8 %v781
        %v783 = vlaneseq
        %v784 = vshrl.u32 %v783, 7
        %v785 = vsub.s32 %v782, %v784
        %v786 = vrot.slane %v770, %v785
        %v788 = vunpack.c.l.s4 1966171168
        %v789 = vunpack.c.0.s8 %v788
        %v790 = vlaneseq
        %v791 = vshrl.u32 %v790, 7
        %v792 = vsub.s32 %v789, %v791
        %v793 = vrot.slane %v771, %v792
        %v795 = vunpack.c.l.s4 1966171168
        %v796 = vunpack.c.0.s8 %v795
        %v797 = vlaneseq
        %v798 = vshrl.u32 %v797, 7
        %v799 = vsub.s32 %v796, %v798
        %v800 = vrot.slane %v772, %v799
        %v801 = vcombine.high %v779, %v779
        %v802 = vcombine.high %v786, %v786
        %v803 = vcombine.high %v793, %v793
        %v804 = vcombine.high %v800, %v800
        %v805 = vcombine.high %v726, %v726
        %v807 = vunpack.c.l.s4 1966171168
        %v808 = vunpack.c.0.s8 %v807
        %v809 = vlaneseq
        %v810 = vshrl.u32 %v809, 7
        %v811 = vsub.s32 %v808, %v810
        %v812 = vrot.slane %v726, %v811
        %v814 = vunpack.c.l.s4 1966171168
        %v815 = vunpack.c.0.s8 %v814
        %v816 = vlaneseq
        %v817 = vshrl.u32 %v816, 7
        %v818 = vsub.s32 %v815, %v817
        %v819 = vrot.slane %v805, %v818
        %v820 = vcombine.high %v812, %v812
        %v821 = vcombine.high %v819, %v819
        %v823 = vunpack.c.l.s4 1966171168
        %v824 = vunpack.c.0.s8 %v823
        %v825 = vlaneseq
        %v826 = vshrl.u32 %v825, 7
        %v827 = vsub.s32 %v824, %v826
        %v828 = vrot.slane %v812, %v827
        %v830 = vunpack.c.l.s4 1966171168
        %v831 = vunpack.c.0.s8 %v830
        %v832 = vlaneseq
        %v833 = vshrl.u32 %v832, 7
        %v834 = vsub.s32 %v831, %v833
        %v835 = vrot.slane %v819, %v834
        %v837 = vunpack.c.l.s4 1966171168
        %v838 = vunpack.c.0.s8 %v837
        %v839 = vlaneseq
        %v840 = vshrl.u32 %v839, 7
        %v841 = vsub.s32 %v838, %v840
        %v842 = vrot.slane %v820, %v841
        %v844 = vunpack.c.l.s4 1966171168
        %v845 = vunpack.c.0.s8 %v844
        %v846 = vlaneseq
        %v847 = vshrl.u32 %v846, 7
        %v848 = vsub.s32 %v845, %v847
        %v849 = vrot.slane %v821, %v848
        %v850 = vcombine.high %v828, %v828
        %v851 = vcombine.high %v835, %v835
        %v852 = vcombine.high %v842, %v842
        %v853 = vcombine.high %v849, %v849
        %v854 = vlaneseq
        %v855 = vshrl.u32 %v854, 7
        %v856 = vsub.s32 0, %v855
        %v857 = vrot.slane %v779, %v856
        %v858 = vlaneseq
        %v859 = vshrl.u32 %v858, 7
        %v860 = vsub.s32 0, %v859
        %v861 = vrot.slane %v793, %v860
        %v862 = vlaneseq
        %v863 = vshrl.u32 %v862, 7
        %v864 = vsub.s32 0, %v863
        %v865 = vrot.slane %v801, %v864
        %v866 = vlaneseq
        %v867 = vshrl.u32 %v866, 7
        %v868 = vsub.s32 0, %v867
        %v869 = vrot.slane %v803, %v868
        %v870 = vlaneseq
        %v871 = vshrl.u32 %v870, 7
        %v872 = vsub.s32 0, %v871
        %v873 = vrot.slane %v786, %v872
        %v874 = vlaneseq
        %v875 = vshrl.u32 %v874, 7
        %v876 = vsub.s32 0, %v875
        %v877 = vrot.slane %v800, %v876
        %v878 = vlaneseq
        %v879 = vshrl.u32 %v878, 7
        %v880 = vsub.s32 0, %v879
        %v881 = vrot.slane %v802, %v880
        %v882 = vlaneseq
        %v883 = vshrl.u32 %v882, 7
        %v884 = vsub.s32 0, %v883
        %v885 = vrot.slane %v804, %v884
        %v886 = vlaneseq
        %v887 = vshrl.u32 %v886, 7
        %v888 = vsub.s32 0, %v887
        %v889 = vrot.slane %v828, %v888
        %v890 = vlaneseq
        %v891 = vshrl.u32 %v890, 7
        %v892 = vsub.s32 0, %v891
        %v893 = vrot.slane %v842, %v892
        %v894 = vlaneseq
        %v895 = vshrl.u32 %v894, 7
        %v896 = vsub.s32 0, %v895
        %v897 = vrot.slane %v850, %v896
        %v898 = vlaneseq
        %v899 = vshrl.u32 %v898, 7
        %v900 = vsub.s32 0, %v899
        %v901 = vrot.slane %v852, %v900
        %v902 = vlaneseq
        %v903 = vshrl.u32 %v902, 7
        %v904 = vsub.s32 0, %v903
        %v905 = vrot.slane %v835, %v904
        %v906 = vlaneseq
        %v907 = vshrl.u32 %v906, 7
        %v908 = vsub.s32 0, %v907
        %v909 = vrot.slane %v849, %v908
        %v910 = vlaneseq
        %v911 = vshrl.u32 %v910, 7
        %v912 = vsub.s32 0, %v911
        %v913 = vrot.slane %v851, %v912
        %v914 = vlaneseq
        %v915 = vshrl.u32 %v914, 7
        %v916 = vsub.s32 0, %v915
        %v917 = vrot.slane %v853, %v916
        %v934 = vmul.f32 %v857, %v752
        %v935 = vmul.f32 %v857, %v753
        %v936 = vmul.f32 %v861, %v752
        %v937 = vmul.f32 %v861, %v753
        %v938 = vmul.f32 %v865, %v752
        %v939 = vmul.f32 %v865, %v753
        %v940 = vmul.f32 %v869, %v752
        %v941 = vmul.f32 %v869, %v753
        %v942 = vmul.f32 %v873, %v752
        %v943 = vmul.f32 %v873, %v753
        %v944 = vmul.f32 %v877, %v752
        %v945 = vmul.f32 %v877, %v753
        %v946 = vmul.f32 %v881, %v752
        %v947 = vmul.f32 %v881, %v753
        %v948 = vmul.f32 %v885, %v752
        %v949 = vmul.f32 %v885, %v753
        %v950 = vmul.f32 %v889, %v752
        %v951 = vmul.f32 %v889, %v753
        %v952 = vmul.f32 %v893, %v752
        %v953 = vmul.f32 %v893, %v753
        %v954 = vmul.f32 %v897, %v752
        %v955 = vmul.f32 %v897, %v753
        %v956 = vmul.f32 %v901, %v752
        %v957 = vmul.f32 %v901, %v753
        %v958 = vmul.f32 %v905, %v752
        %v959 = vmul.f32 %v905, %v753
        %v960 = vmul.f32 %v909, %v752
        %v961 = vmul.f32 %v909, %v753
        %v962 = vmul.f32 %v913, %v752
        %v963 = vmul.f32 %v913, %v753
        %v964 = vmul.f32 %v917, %v752
        %v965 = vmul.f32 %v917, %v753
        %v966 = vld [vmem:[%s257] sm:$0xff]
        %v967 = vld [vmem:[%s257 + $0x8] sm:$0xff]
        %v968 = vld [vmem:[%s257 + $0x10] sm:$0xff]
        %v969 = vld [vmem:[%s257 + $0x18] sm:$0xff]
        %v970 = vld [vmem:[%s257 + $0x20] sm:$0xff]
        %v971 = vld [vmem:[%s257 + $0x28] sm:$0xff]
        %v972 = vld [vmem:[%s257 + $0x30] sm:$0xff]
        %v973 = vld [vmem:[%s257 + $0x38] sm:$0xff]
        %v974 = vpack.c.bf16 %v968, %v966
        %v975 = vpack.c.bf16 %v969, %v967
        %v976 = vpack.c.bf16 %v972, %v970
        %v977 = vpack.c.bf16 %v973, %v971
        %v978 = vpack.c.bf16 %v935, %v934
        %v979 = vpack.c.bf16 %v937, %v936
        %v980 = vpack.c.bf16 %v939, %v938
        %v981 = vpack.c.bf16 %v941, %v940
        %v982 = vpack.c.bf16 %v943, %v942
        %v983 = vpack.c.bf16 %v945, %v944
        %v984 = vpack.c.bf16 %v947, %v946
        %v985 = vpack.c.bf16 %v949, %v948
        %v986 = vpack.c.bf16 %v951, %v950
        %v987 = vpack.c.bf16 %v953, %v952
        %v988 = vpack.c.bf16 %v955, %v954
        %v989 = vpack.c.bf16 %v957, %v956
        %v990 = vpack.c.bf16 %v959, %v958
        %v991 = vpack.c.bf16 %v961, %v960
        %v992 = vpack.c.bf16 %v963, %v962
        %v993 = vpack.c.bf16 %v965, %v964
        %994 = vmatprep.subr.bf16.mxu0 0
        %995 = vmatpush1.bf16.msra.mxu0 %v978
        %996 = vmatprep.subr.bf16.mxu0 0
        %997 = vmatpush1.bf16.msra.mxu0 %v979
        %998 = vmatprep.subr.bf16.mxu0 0
        %999 = vmatpush1.bf16.msra.mxu0 %v980
        %1000 = vmatprep.subr.bf16.mxu0 0
        %1001 = vmatpush1.bf16.msra.mxu0 %v981
        %1002 = vmatprep.subr.bf16.mxu0 0
        %1003 = vmatpush1.bf16.msra.mxu0 %v982
        %1004 = vmatprep.subr.bf16.mxu0 0
        %1005 = vmatpush1.bf16.msra.mxu0 %v983
        %1006 = vmatprep.subr.bf16.mxu0 0
        %1007 = vmatpush1.bf16.msra.mxu0 %v984
        %1008 = vmatprep.subr.bf16.mxu0 0
        %1009 = vmatpush1.bf16.msra.mxu0 %v985
        %1010 = vmatprep.subr.bf16.mxu0 0
        %1011 = vmatpush1.bf16.msra.mxu0 %v986
        %1012 = vmatprep.subr.bf16.mxu0 0
        %1013 = vmatpush1.bf16.msra.mxu0 %v987
        %1014 = vmatprep.subr.bf16.mxu0 0
        %1015 = vmatpush1.bf16.msra.mxu0 %v988
        %1016 = vmatprep.subr.bf16.mxu0 0
        %1017 = vmatpush1.bf16.msra.mxu0 %v989
        %1018 = vmatprep.subr.bf16.mxu0 0
        %1019 = vmatpush1.bf16.msra.mxu0 %v990
        %1020 = vmatprep.subr.bf16.mxu0 0
        %1021 = vmatpush1.bf16.msra.mxu0 %v991
        %1022 = vmatprep.subr.bf16.mxu0 0
        %1023 = vmatpush1.bf16.msra.mxu0 %v992
        %1024 = vmatprep.subr.bf16.mxu0 0
        %1025 = vmatpush1.bf16.msra.mxu0 %v993
        %1026 = vmatprep.mubr.bf16.mxu0 %v975
        %1027 = vmatmul.mubr.bf16.gmra.mrb[0].mxu0 %v974
        %v1028 = vpop.f32.mrb[0].mxu0
        %v1029 = vadd.f32 0.0, %v1028
        %v1030 = vpop.f32.mrb[0].mxu0
        %v1031 = vpop.f32.mrb[0].mxu0
        %v1032 = vadd.f32 0.0, %v1031
        %v1033 = vpop.f32.mrb[0].mxu0
        %1034 = vmatprep.mubr.bf16.mxu0 %v977
        %1035 = vmatmul.mubr.bf16.gmra.mrb[0].mxu0 %v976
        %v1036 = vpop.f32.mrb[0].mxu0
        %v1037 = vadd.f32 0.0, %v1036
        %v1038 = vpop.f32.mrb[0].mxu0
        %v1039 = vpop.f32.mrb[0].mxu0
        %v1040 = vadd.f32 0.0, %v1039
        %v1041 = vpop.f32.mrb[0].mxu0
        %1042 = vdwg.mxu0
        %v1043 = vpack.c.bf16 %v673, %v670
        %v1044 = vpack.c.bf16 %v681, %v678
        %v1045 = vpack.c.bf16 %v1032, %v1029
        %v1046 = vpack.c.bf16 %v1040, %v1037
        %1047 = vxpose.xlu0.c.b16.start [1/8] %v1043, 128
        %1048 = vxpose.xlu0.c.b16.cont [2/8] %v1044, 128
        %1049 = vxpose.xlu0.c.b16.cont [3/8] 0, 128
        %1050 = vxpose.xlu0.c.b16.cont [4/8] 0, 128
        %1051 = vxpose.xlu0.c.b16.cont [5/8] 0, 128
        %1052 = vxpose.xlu0.c.b16.cont [6/8] 0, 128
        %1053 = vxpose.xlu0.c.b16.cont [7/8] 0, 128
        %1054 = vxpose.xlu0.c.b16.end [8/8] 0, 128
        %v1055 = vpop.trf.xlu0
        %v1056 = vpop.trf.xlu0
        %v1057 = vpop.trf.xlu0
        %v1058 = vpop.trf.xlu0
        %v1059 = vpop.trf.xlu0
        %v1060 = vpop.trf.xlu0
        %v1061 = vpop.trf.xlu0
        %v1062 = vpop.trf.xlu0
        %vm1063 = vcmask 261120
        %v1065 = vsel %vm1063, %v1055, 0
        %v1068 = vsel %vm1063, %v1056, 0
        %v1071 = vsel %vm1063, %v1057, 0
        %v1074 = vsel %vm1063, %v1058, 0
        %v1077 = vsel %vm1063, %v1059, 0
        %v1080 = vsel %vm1063, %v1060, 0
        %v1083 = vsel %vm1063, %v1061, 0
        %v1086 = vsel %vm1063, %v1062, 0
        %1088 = vmatprep.subr.bf16.mxu0 0
        %1089 = vmatpush1.bf16.msra.mxu0 %v1045
        %1090 = vmatprep.subr.bf16.mxu0 0
        %1091 = vmatpush1.bf16.msra.mxu0 %v1046
        %1092 = vmatprep.subr.bf16.mxu0 0
        %1093 = vmatpush1.bf16.msra.mxu0 0
        %1094 = vmatprep.subr.bf16.mxu0 0
        %1095 = vmatpush1.bf16.msra.mxu0 0
        %1096 = vmatprep.subr.bf16.mxu0 0
        %1097 = vmatpush1.bf16.msra.mxu0 0
        %1098 = vmatprep.subr.bf16.mxu0 0
        %1099 = vmatpush1.bf16.msra.mxu0 0
        %1100 = vmatprep.subr.bf16.mxu0 0
        %1101 = vmatpush1.bf16.msra.mxu0 0
        %1102 = vmatprep.subr.bf16.mxu0 0
        %1103 = vmatpush1.bf16.msra.mxu0 0
        %1104 = vmatprep.subr.bf16.mxu0 0
        %1105 = vmatpush1.bf16.msra.mxu0 0
        %1106 = vmatprep.subr.bf16.mxu0 0
        %1107 = vmatpush1.bf16.msra.mxu0 0
        %1108 = vmatprep.subr.bf16.mxu0 0
        %1109 = vmatpush1.bf16.msra.mxu0 0
        %1110 = vmatprep.subr.bf16.mxu0 0
        %1111 = vmatpush1.bf16.msra.mxu0 0
        %1112 = vmatprep.subr.bf16.mxu0 0
        %1113 = vmatpush1.bf16.msra.mxu0 0
        %1114 = vmatprep.subr.bf16.mxu0 0
        %1115 = vmatpush1.bf16.msra.mxu0 0
        %1116 = vmatprep.subr.bf16.mxu0 0
        %1117 = vmatpush1.bf16.msra.mxu0 0
        %1118 = vmatprep.subr.bf16.mxu0 0
        %1119 = vmatpush1.bf16.msra.mxu0 0
        %1120 = vmatprep.mubr.bf16.mxu0 0
        %1121 = vmatmul.mubr.bf16.gmra.mrb[0].mxu0 %v1065
        %v1122 = vpop.f32.mrb[0].mxu0
        %v1123 = vadd.f32 0.0, %v1122
        %v1124 = vpop.f32.mrb[0].mxu0
        %v1125 = vpop.f32.mrb[0].mxu0
        %v1126 = vadd.f32 0.0, %v1125
        %v1127 = vpop.f32.mrb[0].mxu0
        %1128 = vmatprep.mubr.bf16.mxu0 0
        %1129 = vmatmul.mubr.bf16.gmra.mrb[0].mxu0 %v1068
        %v1130 = vpop.f32.mrb[0].mxu0
        %v1131 = vadd.f32 0.0, %v1130
        %v1132 = vpop.f32.mrb[0].mxu0
        %v1133 = vpop.f32.mrb[0].mxu0
        %v1134 = vadd.f32 0.0, %v1133
        %v1135 = vpop.f32.mrb[0].mxu0
        %1136 = vmatprep.mubr.bf16.mxu0 0
        %1137 = vmatmul.mubr.bf16.gmra.mrb[0].mxu0 %v1071
        %v1138 = vpop.f32.mrb[0].mxu0
        %v1139 = vadd.f32 0.0, %v1138
        %v1140 = vpop.f32.mrb[0].mxu0
        %v1141 = vpop.f32.mrb[0].mxu0
        %v1142 = vadd.f32 0.0, %v1141
        %v1143 = vpop.f32.mrb[0].mxu0
        %1144 = vmatprep.mubr.bf16.mxu0 0
        %1145 = vmatmul.mubr.bf16.gmra.mrb[0].mxu0 %v1074
        %v1146 = vpop.f32.mrb[0].mxu0
        %v1147 = vadd.f32 0.0, %v1146
        %v1148 = vpop.f32.mrb[0].mxu0
        %v1149 = vpop.f32.mrb[0].mxu0
        %v1150 = vadd.f32 0.0, %v1149
        %v1151 = vpop.f32.mrb[0].mxu0
        %1152 = vmatprep.mubr.bf16.mxu0 0
        %1153 = vmatmul.mubr.bf16.gmra.mrb[0].mxu0 %v1077
        %v1154 = vpop.f32.mrb[0].mxu0
        %v1155 = vadd.f32 0.0, %v1154
        %v1156 = vpop.f32.mrb[0].mxu0
        %v1157 = vpop.f32.mrb[0].mxu0
        %v1158 = vadd.f32 0.0, %v1157
        %v1159 = vpop.f32.mrb[0].mxu0
        %1160 = vmatprep.mubr.bf16.mxu0 0
        %1161 = vmatmul.mubr.bf16.gmra.mrb[0].mxu0 %v1080
        %v1162 = vpop.f32.mrb[0].mxu0
        %v1163 = vadd.f32 0.0, %v1162
        %v1164 = vpop.f32.mrb[0].mxu0
        %v1165 = vpop.f32.mrb[0].mxu0
        %v1166 = vadd.f32 0.0, %v1165
        %v1167 = vpop.f32.mrb[0].mxu0
        %1168 = vmatprep.mubr.bf16.mxu0 0
        %1169 = vmatmul.mubr.bf16.gmra.mrb[0].mxu0 %v1083
        %v1170 = vpop.f32.mrb[0].mxu0
        %v1171 = vadd.f32 0.0, %v1170
        %v1172 = vpop.f32.mrb[0].mxu0
        %v1173 = vpop.f32.mrb[0].mxu0
        %v1174 = vadd.f32 0.0, %v1173
        %v1175 = vpop.f32.mrb[0].mxu0
        %1176 = vmatprep.mubr.bf16.mxu0 0
        %1177 = vmatmul.mubr.bf16.gmra.mrb[0].mxu0 %v1086
        %v1178 = vpop.f32.mrb[0].mxu0
        %v1179 = vadd.f32 0.0, %v1178
        %v1180 = vpop.f32.mrb[0].mxu0
        %v1181 = vpop.f32.mrb[0].mxu0
        %v1182 = vadd.f32 0.0, %v1181
        %v1183 = vpop.f32.mrb[0].mxu0
        %1184 = vdwg.mxu0
        %v1185 = vld [vmem:[%s316] sm:$0xff]
        %v1186 = vld [vmem:[%s316 + $0x8] sm:$0xff]
        %v1187 = vld [vmem:[%s316 + $0x10] sm:$0xff]
        %v1188 = vld [vmem:[%s316 + $0x18] sm:$0xff]
        %v1189 = vld [vmem:[%s316 + $0x20] sm:$0xff]
        %v1190 = vld [vmem:[%s316 + $0x28] sm:$0xff]
        %v1191 = vld [vmem:[%s316 + $0x30] sm:$0xff]
        %v1192 = vld [vmem:[%s316 + $0x38] sm:$0xff]
        %v1193 = vld [vmem:[%s316 + $0x40] sm:$0xff]
        %v1194 = vld [vmem:[%s316 + $0x48] sm:$0xff]
        %v1195 = vld [vmem:[%s316 + $0x50] sm:$0xff]
        %v1196 = vld [vmem:[%s316 + $0x58] sm:$0xff]
        %v1197 = vld [vmem:[%s316 + $0x60] sm:$0xff]
        %v1198 = vld [vmem:[%s316 + $0x68] sm:$0xff]
        %v1199 = vld [vmem:[%s316 + $0x70] sm:$0xff]
        %v1200 = vld [vmem:[%s316 + $0x78] sm:$0xff]
        %v1201 = vld [vmem:[%s320] sm:$0x1]
        %v1202 = vld [vmem:[%s320 + $0x1] sm:$0x1]
        %v1203 = vld [vmem:[%s320 + $0x2] sm:$0x1]
        %v1204 = vld [vmem:[%s320 + $0x3] sm:$0x1]
        %1206 = vset.pattern.permute.xlu0 2
        %1207 = vperm.xlu0 %1206, %v1185
        %v1208 = vpop.permute.xlu0 %1207
        %1211 = vset.pattern.permute.xlu0 2
        %1212 = vperm.xlu0 %1211, %v1186
        %v1213 = vpop.permute.xlu0 %1212
        %1216 = vset.pattern.permute.xlu0 2
        %1217 = vperm.xlu0 %1216, %v1187
        %v1218 = vpop.permute.xlu0 %1217
        %1221 = vset.pattern.permute.xlu0 2
        %1222 = vperm.xlu0 %1221, %v1188
        %v1223 = vpop.permute.xlu0 %1222
        %1226 = vset.pattern.permute.xlu0 2
        %1227 = vperm.xlu0 %1226, %v1189
        %v1228 = vpop.permute.xlu0 %1227
        %1231 = vset.pattern.permute.xlu0 2
        %1232 = vperm.xlu0 %1231, %v1190
        %v1233 = vpop.permute.xlu0 %1232
        %1236 = vset.pattern.permute.xlu0 2
        %1237 = vperm.xlu0 %1236, %v1191
        %v1238 = vpop.permute.xlu0 %1237
        %1241 = vset.pattern.permute.xlu0 2
        %1242 = vperm.xlu0 %1241, %v1192
        %v1243 = vpop.permute.xlu0 %1242
        %1246 = vset.pattern.permute.xlu0 2
        %1247 = vperm.xlu0 %1246, %v1193
        %v1248 = vpop.permute.xlu0 %1247
        %1251 = vset.pattern.permute.xlu0 2
        %1252 = vperm.xlu0 %1251, %v1194
        %v1253 = vpop.permute.xlu0 %1252
        %1256 = vset.pattern.permute.xlu0 2
        %1257 = vperm.xlu0 %1256, %v1195
        %v1258 = vpop.permute.xlu0 %1257
        %1261 = vset.pattern.permute.xlu0 2
        %1262 = vperm.xlu0 %1261, %v1196
        %v1263 = vpop.permute.xlu0 %1262
        %1266 = vset.pattern.permute.xlu0 2
        %1267 = vperm.xlu0 %1266, %v1197
        %v1268 = vpop.permute.xlu0 %1267
        %1271 = vset.pattern.permute.xlu0 2
        %1272 = vperm.xlu0 %1271, %v1198
        %v1273 = vpop.permute.xlu0 %1272
        %1276 = vset.pattern.permute.xlu0 2
        %1277 = vperm.xlu0 %1276, %v1199
        %v1278 = vpop.permute.xlu0 %1277
        %1281 = vset.pattern.permute.xlu0 2
        %1282 = vperm.xlu0 %1281, %v1200
        %v1283 = vpop.permute.xlu0 %1282
        %v1285 = vlaneseq
        %v1286 = vshrl.u32 %v1285, 7
        %v1287 = vsub.s32 0, %v1286
        %v1288 = vrot.slane %v1201, %v1287
        %v1289 = vsub.f32 %v1208, %v1288
        %v1290 = vsub.f32 %v1213, %v1288
        %v1291 = vsub.f32 %v1218, %v1288
        %v1292 = vsub.f32 %v1223, %v1288
        %v1293 = vsub.f32 %v1228, %v1288
        %v1294 = vsub.f32 %v1233, %v1288
        %v1295 = vsub.f32 %v1238, %v1288
        %v1296 = vsub.f32 %v1243, %v1288
        %v1297 = vsub.f32 %v1248, %v1288
        %v1298 = vsub.f32 %v1253, %v1288
        %v1299 = vsub.f32 %v1258, %v1288
        %v1300 = vsub.f32 %v1263, %v1288
        %v1301 = vsub.f32 %v1268, %v1288
        %v1302 = vsub.f32 %v1273, %v1288
        %v1303 = vsub.f32 %v1278, %v1288
        %v1304 = vsub.f32 %v1283, %v1288
        %1305 = vset.pattern.permute.xlu0 3
        %1306 = vperm.xlu0 %1305, %v1185
        %v1307 = vpop.permute.xlu0 %1306
        %1309 = vset.pattern.permute.xlu0 3
        %1310 = vperm.xlu0 %1309, %v1186
        %v1311 = vpop.permute.xlu0 %1310
        %1313 = vset.pattern.permute.xlu0 3
        %1314 = vperm.xlu0 %1313, %v1187
        %v1315 = vpop.permute.xlu0 %1314
        %1317 = vset.pattern.permute.xlu0 3
        %1318 = vperm.xlu0 %1317, %v1188
        %v1319 = vpop.permute.xlu0 %1318
        %1321 = vset.pattern.permute.xlu0 3
        %1322 = vperm.xlu0 %1321, %v1189
        %v1323 = vpop.permute.xlu0 %1322
        %1325 = vset.pattern.permute.xlu0 3
        %1326 = vperm.xlu0 %1325, %v1190
        %v1327 = vpop.permute.xlu0 %1326
        %1329 = vset.pattern.permute.xlu0 3
        %1330 = vperm.xlu0 %1329, %v1191
        %v1331 = vpop.permute.xlu0 %1330
        %1333 = vset.pattern.permute.xlu0 3
        %1334 = vperm.xlu0 %1333, %v1192
        %v1335 = vpop.permute.xlu0 %1334
        %1337 = vset.pattern.permute.xlu0 3
        %1338 = vperm.xlu0 %1337, %v1193
        %v1339 = vpop.permute.xlu0 %1338
        %1341 = vset.pattern.permute.xlu0 3
        %1342 = vperm.xlu0 %1341, %v1194
        %v1343 = vpop.permute.xlu0 %1342
        %1345 = vset.pattern.permute.xlu0 3
        %1346 = vperm.xlu0 %1345, %v1195
        %v1347 = vpop.permute.xlu0 %1346
        %1349 = vset.pattern.permute.xlu0 3
        %1350 = vperm.xlu0 %1349, %v1196
        %v1351 = vpop.permute.xlu0 %1350
        %1353 = vset.pattern.permute.xlu0 3
        %1354 = vperm.xlu0 %1353, %v1197
        %v1355 = vpop.permute.xlu0 %1354
        %1357 = vset.pattern.permute.xlu0 3
        %1358 = vperm.xlu0 %1357, %v1198
        %v1359 = vpop.permute.xlu0 %1358
        %1361 = vset.pattern.permute.xlu0 3
        %1362 = vperm.xlu0 %1361, %v1199
        %v1363 = vpop.permute.xlu0 %1362
        %1365 = vset.pattern.permute.xlu0 3
        %1366 = vperm.xlu0 %1365, %v1200
        %v1367 = vpop.permute.xlu0 %1366
        %v1369 = vlaneseq
        %v1370 = vshrl.u32 %v1369, 7
        %v1371 = vsub.s32 0, %v1370
        %v1372 = vrot.slane %v1202, %v1371
        %v1373 = vsub.f32 %v1307, %v1372
        %v1374 = vsub.f32 %v1311, %v1372
        %v1375 = vsub.f32 %v1315, %v1372
        %v1376 = vsub.f32 %v1319, %v1372
        %v1377 = vsub.f32 %v1323, %v1372
        %v1378 = vsub.f32 %v1327, %v1372
        %v1379 = vsub.f32 %v1331, %v1372
        %v1380 = vsub.f32 %v1335, %v1372
        %v1381 = vsub.f32 %v1339, %v1372
        %v1382 = vsub.f32 %v1343, %v1372
        %v1383 = vsub.f32 %v1347, %v1372
        %v1384 = vsub.f32 %v1351, %v1372
        %v1385 = vsub.f32 %v1355, %v1372
        %v1386 = vsub.f32 %v1359, %v1372
        %v1387 = vsub.f32 %v1363, %v1372
        %v1388 = vsub.f32 %v1367, %v1372
        %v1389 = vmul.f32 %v1289, %v1289
        %v1390 = vmul.f32 %v1290, %v1290
        %v1391 = vmul.f32 %v1291, %v1291
        %v1392 = vmul.f32 %v1292, %v1292
        %v1393 = vmul.f32 %v1293, %v1293
        %v1394 = vmul.f32 %v1294, %v1294
        %v1395 = vmul.f32 %v1295, %v1295
        %v1396 = vmul.f32 %v1296, %v1296
        %v1397 = vmul.f32 %v1297, %v1297
        %v1398 = vmul.f32 %v1298, %v1298
        %v1399 = vmul.f32 %v1299, %v1299
        %v1400 = vmul.f32 %v1300, %v1300
        %v1401 = vmul.f32 %v1301, %v1301
        %v1402 = vmul.f32 %v1302, %v1302
        %v1403 = vmul.f32 %v1303, %v1303
        %v1404 = vmul.f32 %v1304, %v1304
        %v1405 = vmul.f32 %v1373, %v1373
        %v1406 = vmul.f32 %v1374, %v1374
        %v1407 = vmul.f32 %v1375, %v1375
        %v1408 = vmul.f32 %v1376, %v1376
        %v1409 = vmul.f32 %v1377, %v1377
        %v1410 = vmul.f32 %v1378, %v1378
        %v1411 = vmul.f32 %v1379, %v1379
        %v1412 = vmul.f32 %v1380, %v1380
        %v1413 = vmul.f32 %v1381, %v1381
        %v1414 = vmul.f32 %v1382, %v1382
        %v1415 = vmul.f32 %v1383, %v1383
        %v1416 = vmul.f32 %v1384, %v1384
        %v1417 = vmul.f32 %v1385, %v1385
        %v1418 = vmul.f32 %v1386, %v1386
        %v1419 = vmul.f32 %v1387, %v1387
        %v1420 = vmul.f32 %v1388, %v1388
        %v1421 = vadd.f32 %v1389, %v1405
        %v1422 = vadd.f32 %v1390, %v1406
        %v1423 = vadd.f32 %v1391, %v1407
        %v1424 = vadd.f32 %v1392, %v1408
        %v1425 = vadd.f32 %v1393, %v1409
        %v1426 = vadd.f32 %v1394, %v1410
        %v1427 = vadd.f32 %v1395, %v1411
        %v1428 = vadd.f32 %v1396, %v1412
        %v1429 = vadd.f32 %v1397, %v1413
        %v1430 = vadd.f32 %v1398, %v1414
        %v1431 = vadd.f32 %v1399, %v1415
        %v1432 = vadd.f32 %v1400, %v1416
        %v1433 = vadd.f32 %v1401, %v1417
        %v1434 = vadd.f32 %v1402, %v1418
        %v1435 = vadd.f32 %v1403, %v1419
        %v1436 = vadd.f32 %v1404, %v1420
        %1437 = vset.pattern.permute.xlu0 0
        %1438 = vperm.xlu0 %1437, %v1185
        %v1439 = vpop.permute.xlu0 %1438
        %1441 = vset.pattern.permute.xlu0 0
        %1442 = vperm.xlu0 %1441, %v1186
        %v1443 = vpop.permute.xlu0 %1442
        %1445 = vset.pattern.permute.xlu0 0
        %1446 = vperm.xlu0 %1445, %v1187
        %v1447 = vpop.permute.xlu0 %1446
        %1449 = vset.pattern.permute.xlu0 0
        %1450 = vperm.xlu0 %1449, %v1188
        %v1451 = vpop.permute.xlu0 %1450
        %1453 = vset.pattern.permute.xlu0 0
        %1454 = vperm.xlu0 %1453, %v1189
        %v1455 = vpop.permute.xlu0 %1454
        %1457 = vset.pattern.permute.xlu0 0
        %1458 = vperm.xlu0 %1457, %v1190
        %v1459 = vpop.permute.xlu0 %1458
        %1461 = vset.pattern.permute.xlu0 0
        %1462 = vperm.xlu0 %1461, %v1191
        %v1463 = vpop.permute.xlu0 %1462
        %1465 = vset.pattern.permute.xlu0 0
        %1466 = vperm.xlu0 %1465, %v1192
        %v1467 = vpop.permute.xlu0 %1466
        %1469 = vset.pattern.permute.xlu0 0
        %1470 = vperm.xlu0 %1469, %v1193
        %v1471 = vpop.permute.xlu0 %1470
        %1473 = vset.pattern.permute.xlu0 0
        %1474 = vperm.xlu0 %1473, %v1194
        %v1475 = vpop.permute.xlu0 %1474
        %1477 = vset.pattern.permute.xlu0 0
        %1478 = vperm.xlu0 %1477, %v1195
        %v1479 = vpop.permute.xlu0 %1478
        %1481 = vset.pattern.permute.xlu0 0
        %1482 = vperm.xlu0 %1481, %v1196
        %v1483 = vpop.permute.xlu0 %1482
        %1485 = vset.pattern.permute.xlu0 0
        %1486 = vperm.xlu0 %1485, %v1197
        %v1487 = vpop.permute.xlu0 %1486
        %1489 = vset.pattern.permute.xlu0 0
        %1490 = vperm.xlu0 %1489, %v1198
        %v1491 = vpop.permute.xlu0 %1490
        %1493 = vset.pattern.permute.xlu0 0
        %1494 = vperm.xlu0 %1493, %v1199
        %v1495 = vpop.permute.xlu0 %1494
        %1497 = vset.pattern.permute.xlu0 0
        %1498 = vperm.xlu0 %1497, %v1200
        %v1499 = vpop.permute.xlu0 %1498
        %v1501 = vlaneseq
        %v1502 = vshrl.u32 %v1501, 7
        %v1503 = vsub.s32 0, %v1502
        %v1504 = vrot.slane %v1203, %v1503
        %v1505 = vsub.f32 %v1439, %v1504
        %v1506 = vsub.f32 %v1443, %v1504
        %v1507 = vsub.f32 %v1447, %v1504
        %v1508 = vsub.f32 %v1451, %v1504
        %v1509 = vsub.f32 %v1455, %v1504
        %v1510 = vsub.f32 %v1459, %v1504
        %v1511 = vsub.f32 %v1463, %v1504
        %v1512 = vsub.f32 %v1467, %v1504
        %v1513 = vsub.f32 %v1471, %v1504
        %v1514 = vsub.f32 %v1475, %v1504
        %v1515 = vsub.f32 %v1479, %v1504
        %v1516 = vsub.f32 %v1483, %v1504
        %v1517 = vsub.f32 %v1487, %v1504
        %v1518 = vsub.f32 %v1491, %v1504
        %v1519 = vsub.f32 %v1495, %v1504
        %v1520 = vsub.f32 %v1499, %v1504
        %1521 = vset.pattern.permute.xlu0 1
        %1522 = vperm.xlu0 %1521, %v1185
        %v1523 = vpop.permute.xlu0 %1522
        %1525 = vset.pattern.permute.xlu0 1
        %1526 = vperm.xlu0 %1525, %v1186
        %v1527 = vpop.permute.xlu0 %1526
        %1529 = vset.pattern.permute.xlu0 1
        %1530 = vperm.xlu0 %1529, %v1187
        %v1531 = vpop.permute.xlu0 %1530
        %1533 = vset.pattern.permute.xlu0 1
        %1534 = vperm.xlu0 %1533, %v1188
        %v1535 = vpop.permute.xlu0 %1534
        %1537 = vset.pattern.permute.xlu0 1
        %1538 = vperm.xlu0 %1537, %v1189
        %v1539 = vpop.permute.xlu0 %1538
        %1541 = vset.pattern.permute.xlu0 1
        %1542 = vperm.xlu0 %1541, %v1190
        %v1543 = vpop.permute.xlu0 %1542
        %1545 = vset.pattern.permute.xlu0 1
        %1546 = vperm.xlu0 %1545, %v1191
        %v1547 = vpop.permute.xlu0 %1546
        %1549 = vset.pattern.permute.xlu0 1
        %1550 = vperm.xlu0 %1549, %v1192
        %v1551 = vpop.permute.xlu0 %1550
        %1553 = vset.pattern.permute.xlu0 1
        %1554 = vperm.xlu0 %1553, %v1193
        %v1555 = vpop.permute.xlu0 %1554
        %1557 = vset.pattern.permute.xlu0 1
        %1558 = vperm.xlu0 %1557, %v1194
        %v1559 = vpop.permute.xlu0 %1558
        %1561 = vset.pattern.permute.xlu0 1
        %1562 = vperm.xlu0 %1561, %v1195
        %v1563 = vpop.permute.xlu0 %1562
        %1565 = vset.pattern.permute.xlu0 1
        %1566 = vperm.xlu0 %1565, %v1196
        %v1567 = vpop.permute.xlu0 %1566
        %1569 = vset.pattern.permute.xlu0 1
        %1570 = vperm.xlu0 %1569, %v1197
        %v1571 = vpop.permute.xlu0 %1570
        %1573 = vset.pattern.permute.xlu0 1
        %1574 = vperm.xlu0 %1573, %v1198
        %v1575 = vpop.permute.xlu0 %1574
        %1577 = vset.pattern.permute.xlu0 1
        %1578 = vperm.xlu0 %1577, %v1199
        %v1579 = vpop.permute.xlu0 %1578
        %1581 = vset.pattern.permute.xlu0 1
        %1582 = vperm.xlu0 %1581, %v1200
        %v1583 = vpop.permute.xlu0 %1582
        %v1585 = vlaneseq
        %v1586 = vshrl.u32 %v1585, 7
        %v1587 = vsub.s32 0, %v1586
        %v1588 = vrot.slane %v1204, %v1587
        %v1589 = vsub.f32 %v1523, %v1588
        %v1590 = vsub.f32 %v1527, %v1588
        %v1591 = vsub.f32 %v1531, %v1588
        %v1592 = vsub.f32 %v1535, %v1588
        %v1593 = vsub.f32 %v1539, %v1588
        %v1594 = vsub.f32 %v1543, %v1588
        %v1595 = vsub.f32 %v1547, %v1588
        %v1596 = vsub.f32 %v1551, %v1588
        %v1597 = vsub.f32 %v1555, %v1588
        %v1598 = vsub.f32 %v1559, %v1588
        %v1599 = vsub.f32 %v1563, %v1588
        %v1600 = vsub.f32 %v1567, %v1588
        %v1601 = vsub.f32 %v1571, %v1588
        %v1602 = vsub.f32 %v1575, %v1588
        %v1603 = vsub.f32 %v1579, %v1588
        %v1604 = vsub.f32 %v1583, %v1588
        %v1605 = vmul.f32 %v1505, %v1505
        %v1606 = vmul.f32 %v1506, %v1506
        %v1607 = vmul.f32 %v1507, %v1507
        %v1608 = vmul.f32 %v1508, %v1508
        %v1609 = vmul.f32 %v1509, %v1509
        %v1610 = vmul.f32 %v1510, %v1510
        %v1611 = vmul.f32 %v1511, %v1511
        %v1612 = vmul.f32 %v1512, %v1512
        %v1613 = vmul.f32 %v1513, %v1513
        %v1614 = vmul.f32 %v1514, %v1514
        %v1615 = vmul.f32 %v1515, %v1515
        %v1616 = vmul.f32 %v1516, %v1516
        %v1617 = vmul.f32 %v1517, %v1517
        %v1618 = vmul.f32 %v1518, %v1518
        %v1619 = vmul.f32 %v1519, %v1519
        %v1620 = vmul.f32 %v1520, %v1520
        %v1621 = vmul.f32 %v1589, %v1589
        %v1622 = vmul.f32 %v1590, %v1590
        %v1623 = vmul.f32 %v1591, %v1591
        %v1624 = vmul.f32 %v1592, %v1592
        %v1625 = vmul.f32 %v1593, %v1593
        %v1626 = vmul.f32 %v1594, %v1594
        %v1627 = vmul.f32 %v1595, %v1595
        %v1628 = vmul.f32 %v1596, %v1596
        %v1629 = vmul.f32 %v1597, %v1597
        %v1630 = vmul.f32 %v1598, %v1598
        %v1631 = vmul.f32 %v1599, %v1599
        %v1632 = vmul.f32 %v1600, %v1600
        %v1633 = vmul.f32 %v1601, %v1601
        %v1634 = vmul.f32 %v1602, %v1602
        %v1635 = vmul.f32 %v1603, %v1603
        %v1636 = vmul.f32 %v1604, %v1604
        %v1637 = vadd.f32 %v1605, %v1621
        %v1638 = vadd.f32 %v1606, %v1622
        %v1639 = vadd.f32 %v1607, %v1623
        %v1640 = vadd.f32 %v1608, %v1624
        %v1641 = vadd.f32 %v1609, %v1625
        %v1642 = vadd.f32 %v1610, %v1626
        %v1643 = vadd.f32 %v1611, %v1627
        %v1644 = vadd.f32 %v1612, %v1628
        %v1645 = vadd.f32 %v1613, %v1629
        %v1646 = vadd.f32 %v1614, %v1630
        %v1647 = vadd.f32 %v1615, %v1631
        %v1648 = vadd.f32 %v1616, %v1632
        %v1649 = vadd.f32 %v1617, %v1633
        %v1650 = vadd.f32 %v1618, %v1634
        %v1651 = vadd.f32 %v1619, %v1635
        %v1652 = vadd.f32 %v1620, %v1636
        %1653 = vmin.xlane.f32.xlu0 %v1421
        %v1654 = vpop.xlane.xlu0 %1653
        %1655 = vmin.xlane.f32.xlu0 %v1422
        %v1656 = vpop.xlane.xlu0 %1655
        %1657 = vmin.xlane.f32.xlu0 %v1423
        %v1658 = vpop.xlane.xlu0 %1657
        %1659 = vmin.xlane.f32.xlu0 %v1424
        %v1660 = vpop.xlane.xlu0 %1659
        %1661 = vmin.xlane.f32.xlu0 %v1425
        %v1662 = vpop.xlane.xlu0 %1661
        %1663 = vmin.xlane.f32.xlu0 %v1426
        %v1664 = vpop.xlane.xlu0 %1663
        %1665 = vmin.xlane.f32.xlu0 %v1427
        %v1666 = vpop.xlane.xlu0 %1665
        %1667 = vmin.xlane.f32.xlu0 %v1428
        %v1668 = vpop.xlane.xlu0 %1667
        %1669 = vmin.xlane.f32.xlu0 %v1429
        %v1670 = vpop.xlane.xlu0 %1669
        %1671 = vmin.xlane.f32.xlu0 %v1430
        %v1672 = vpop.xlane.xlu0 %1671
        %1673 = vmin.xlane.f32.xlu0 %v1431
        %v1674 = vpop.xlane.xlu0 %1673
        %1675 = vmin.xlane.f32.xlu0 %v1432
        %v1676 = vpop.xlane.xlu0 %1675
        %1677 = vmin.xlane.f32.xlu0 %v1433
        %v1678 = vpop.xlane.xlu0 %1677
        %1679 = vmin.xlane.f32.xlu0 %v1434
        %v1680 = vpop.xlane.xlu0 %1679
        %1681 = vmin.xlane.f32.xlu0 %v1435
        %v1682 = vpop.xlane.xlu0 %1681
        %1683 = vmin.xlane.f32.xlu0 %v1436
        %v1684 = vpop.xlane.xlu0 %1683
        %v1685 = vmin.f32 %v1637, %v1641
        %v1686 = vmin.f32 %v1638, %v1642
        %v1687 = vmin.f32 %v1639, %v1643
        %v1688 = vmin.f32 %v1640, %v1644
        %v1689 = vmin.f32 %v1685, %v1645
        %v1690 = vmin.f32 %v1686, %v1646
        %v1691 = vmin.f32 %v1687, %v1647
        %v1692 = vmin.f32 %v1688, %v1648
        %v1693 = vmin.f32 %v1689, %v1649
        %v1694 = vmin.f32 %v1690, %v1650
        %v1695 = vmin.f32 %v1691, %v1651
        %v1696 = vmin.f32 %v1692, %v1652
        %v1697 = vmin.f32 %v1693, %v1694
        %v1698 = vmin.f32 %v1695, %v1696
        %v1699 = vmin.f32 %v1697, %v1698
        %v1700 = vrot.slane %v1699, 4
        %v1701 = vmin.f32 %v1699, %v1700
        %v1702 = vrot.slane %v1701, 2
        %v1703 = vmin.f32 %v1701, %v1702
        %v1704 = vrot.slane %v1703, 1
        %v1705 = vmin.f32 %v1703, %v1704
        %vm1706 = vcmp.eq.f32.partialorder %v1421, %v1654
        %vm1707 = vcmp.eq.f32.partialorder %v1422, %v1656
        %vm1708 = vcmp.eq.f32.partialorder %v1423, %v1658
        %vm1709 = vcmp.eq.f32.partialorder %v1424, %v1660
        %vm1710 = vcmp.eq.f32.partialorder %v1425, %v1662
        %vm1711 = vcmp.eq.f32.partialorder %v1426, %v1664
        %vm1712 = vcmp.eq.f32.partialorder %v1427, %v1666
        %vm1713 = vcmp.eq.f32.partialorder %v1428, %v1668
        %vm1714 = vcmp.eq.f32.partialorder %v1429, %v1670
        %vm1715 = vcmp.eq.f32.partialorder %v1430, %v1672
        %vm1716 = vcmp.eq.f32.partialorder %v1431, %v1674
        %vm1717 = vcmp.eq.f32.partialorder %v1432, %v1676
        %vm1718 = vcmp.eq.f32.partialorder %v1433, %v1678
        %vm1719 = vcmp.eq.f32.partialorder %v1434, %v1680
        %vm1720 = vcmp.eq.f32.partialorder %v1435, %v1682
        %vm1721 = vcmp.eq.f32.partialorder %v1436, %v1684
        %vm1722 = vcmp.eq.f32.partialorder %v1637, %v1705
        %vm1723 = vcmp.eq.f32.partialorder %v1638, %v1705
        %vm1724 = vcmp.eq.f32.partialorder %v1639, %v1705
        %vm1725 = vcmp.eq.f32.partialorder %v1640, %v1705
        %vm1726 = vcmp.eq.f32.partialorder %v1641, %v1705
        %vm1727 = vcmp.eq.f32.partialorder %v1642, %v1705
        %vm1728 = vcmp.eq.f32.partialorder %v1643, %v1705
        %vm1729 = vcmp.eq.f32.partialorder %v1644, %v1705
        %vm1730 = vcmp.eq.f32.partialorder %v1645, %v1705
        %vm1731 = vcmp.eq.f32.partialorder %v1646, %v1705
        %vm1732 = vcmp.eq.f32.partialorder %v1647, %v1705
        %vm1733 = vcmp.eq.f32.partialorder %v1648, %v1705
        %vm1734 = vcmp.eq.f32.partialorder %v1649, %v1705
        %vm1735 = vcmp.eq.f32.partialorder %v1650, %v1705
        %vm1736 = vcmp.eq.f32.partialorder %v1651, %v1705
        %vm1737 = vcmp.eq.f32.partialorder %v1652, %v1705
        %vm1738 = vmand %vm1706, %vm1722
        %vm1739 = vmand %vm1707, %vm1723
        %vm1740 = vmand %vm1708, %vm1724
        %vm1741 = vmand %vm1709, %vm1725
        %vm1742 = vmand %vm1710, %vm1726
        %vm1743 = vmand %vm1711, %vm1727
        %vm1744 = vmand %vm1712, %vm1728
        %vm1745 = vmand %vm1713, %vm1729
        %vm1746 = vmand %vm1714, %vm1730
        %vm1747 = vmand %vm1715, %vm1731
        %vm1748 = vmand %vm1716, %vm1732
        %vm1749 = vmand %vm1717, %vm1733
        %vm1750 = vmand %vm1718, %vm1734
        %vm1751 = vmand %vm1719, %vm1735
        %vm1752 = vmand %vm1720, %vm1736
        %vm1753 = vmand %vm1721, %vm1737
        %vm1754 = vcmp.lt.f32.partialorder %v1654, 0.0001
        %vm1755 = vcmp.lt.f32.partialorder %v1656, 0.0001
        %vm1756 = vcmp.lt.f32.partialorder %v1658, 0.0001
        %vm1757 = vcmp.lt.f32.partialorder %v1660, 0.0001
        %vm1758 = vcmp.lt.f32.partialorder %v1662, 0.0001
        %vm1759 = vcmp.lt.f32.partialorder %v1664, 0.0001
        %vm1760 = vcmp.lt.f32.partialorder %v1666, 0.0001
        %vm1761 = vcmp.lt.f32.partialorder %v1668, 0.0001
        %vm1762 = vcmp.lt.f32.partialorder %v1670, 0.0001
        %vm1763 = vcmp.lt.f32.partialorder %v1672, 0.0001
        %vm1764 = vcmp.lt.f32.partialorder %v1674, 0.0001
        %vm1765 = vcmp.lt.f32.partialorder %v1676, 0.0001
        %vm1766 = vcmp.lt.f32.partialorder %v1678, 0.0001
        %vm1767 = vcmp.lt.f32.partialorder %v1680, 0.0001
        %vm1768 = vcmp.lt.f32.partialorder %v1682, 0.0001
        %vm1769 = vcmp.lt.f32.partialorder %v1684, 0.0001
        %v1770 = vsel %vm1754, 1, 0
        %v1771 = vsel %vm1755, 1, 0
        %v1772 = vsel %vm1756, 1, 0
        %v1773 = vsel %vm1757, 1, 0
        %v1774 = vsel %vm1758, 1, 0
        %v1775 = vsel %vm1759, 1, 0
        %v1776 = vsel %vm1760, 1, 0
        %v1777 = vsel %vm1761, 1, 0
        %v1778 = vsel %vm1762, 1, 0
        %v1779 = vsel %vm1763, 1, 0
        %v1780 = vsel %vm1764, 1, 0
        %v1781 = vsel %vm1765, 1, 0
        %v1782 = vsel %vm1766, 1, 0
        %v1783 = vsel %vm1767, 1, 0
        %v1784 = vsel %vm1768, 1, 0
        %v1785 = vsel %vm1769, 1, 0
        %vm1786 = vcmp.eq.s32.totalorder %v1770, 1
        %vm1787 = vcmp.eq.s32.totalorder %v1771, 1
        %vm1788 = vcmp.eq.s32.totalorder %v1772, 1
        %vm1789 = vcmp.eq.s32.totalorder %v1773, 1
        %vm1790 = vcmp.eq.s32.totalorder %v1774, 1
        %vm1791 = vcmp.eq.s32.totalorder %v1775, 1
        %vm1792 = vcmp.eq.s32.totalorder %v1776, 1
        %vm1793 = vcmp.eq.s32.totalorder %v1777, 1
        %vm1794 = vcmp.eq.s32.totalorder %v1778, 1
        %vm1795 = vcmp.eq.s32.totalorder %v1779, 1
        %vm1796 = vcmp.eq.s32.totalorder %v1780, 1
        %vm1797 = vcmp.eq.s32.totalorder %v1781, 1
        %vm1798 = vcmp.eq.s32.totalorder %v1782, 1
        %vm1799 = vcmp.eq.s32.totalorder %v1783, 1
        %vm1800 = vcmp.eq.s32.totalorder %v1784, 1
        %vm1801 = vcmp.eq.s32.totalorder %v1785, 1
        %vm1802 = vmand %vm1738, %vm1786
        %vm1803 = vmand %vm1739, %vm1787
        %vm1804 = vmand %vm1740, %vm1788
        %vm1805 = vmand %vm1741, %vm1789
        %vm1806 = vmand %vm1742, %vm1790
        %vm1807 = vmand %vm1743, %vm1791
        %vm1808 = vmand %vm1744, %vm1792
        %vm1809 = vmand %vm1745, %vm1793
        %vm1810 = vmand %vm1746, %vm1794
        %vm1811 = vmand %vm1747, %vm1795
        %vm1812 = vmand %vm1748, %vm1796
        %vm1813 = vmand %vm1749, %vm1797
        %vm1814 = vmand %vm1750, %vm1798
        %vm1815 = vmand %vm1751, %vm1799
        %vm1816 = vmand %vm1752, %vm1800
        %vm1817 = vmand %vm1753, %vm1801
        %vm1818 = vcmp.lt.f32.partialorder %v1705, 0.0001
        %v1819 = vsel %vm1818, 1, 0
        %vm1820 = vcmp.eq.s32.totalorder %v1819, 1
        %vm1821 = vmand %vm1802, %vm1820
        %vm1822 = vmand %vm1803, %vm1820
        %vm1823 = vmand %vm1804, %vm1820
        %vm1824 = vmand %vm1805, %vm1820
        %vm1825 = vmand %vm1806, %vm1820
        %vm1826 = vmand %vm1807, %vm1820
        %vm1827 = vmand %vm1808, %vm1820
        %vm1828 = vmand %vm1809, %vm1820
        %vm1829 = vmand %vm1810, %vm1820
        %vm1830 = vmand %vm1811, %vm1820
        %vm1831 = vmand %vm1812, %vm1820
        %vm1832 = vmand %vm1813, %vm1820
        %vm1833 = vmand %vm1814, %vm1820
        %vm1834 = vmand %vm1815, %vm1820
        %vm1835 = vmand %vm1816, %vm1820
        %vm1836 = vmand %vm1817, %vm1820
        %v1837 = vsel %vm1821, 1, 0
        %v1838 = vsel %vm1822, 1, 0
        %v1839 = vsel %vm1823, 1, 0
        %v1840 = vsel %vm1824, 1, 0
        %v1841 = vsel %vm1825, 1, 0
        %v1842 = vsel %vm1826, 1, 0
        %v1843 = vsel %vm1827, 1, 0
        %v1844 = vsel %vm1828, 1, 0
        %v1845 = vsel %vm1829, 1, 0
        %v1846 = vsel %vm1830, 1, 0
        %v1847 = vsel %vm1831, 1, 0
        %v1848 = vsel %vm1832, 1, 0
        %v1849 = vsel %vm1833, 1, 0
        %v1850 = vsel %vm1834, 1, 0
        %v1851 = vsel %vm1835, 1, 0
        %v1852 = vsel %vm1836, 1, 0
        %v1853 = vcvt.s32.f32 %v1837
        %v1854 = vcvt.s32.f32 %v1838
        %v1855 = vcvt.s32.f32 %v1839
        %v1856 = vcvt.s32.f32 %v1840
        %v1857 = vcvt.s32.f32 %v1841
        %v1858 = vcvt.s32.f32 %v1842
        %v1859 = vcvt.s32.f32 %v1843
        %v1860 = vcvt.s32.f32 %v1844
        %v1861 = vcvt.s32.f32 %v1845
        %v1862 = vcvt.s32.f32 %v1846
        %v1863 = vcvt.s32.f32 %v1847
        %v1864 = vcvt.s32.f32 %v1848
        %v1865 = vcvt.s32.f32 %v1849
        %v1866 = vcvt.s32.f32 %v1850
        %v1867 = vcvt.s32.f32 %v1851
        %v1868 = vcvt.s32.f32 %v1852
        %1869 = vmax.xlane.f32.xlu0 %v1123
        %v1870 = vpop.xlane.xlu0 %1869
        %1871 = vmax.xlane.f32.xlu0 %v1126
        %v1872 = vpop.xlane.xlu0 %1871
        %1873 = vmax.xlane.f32.xlu0 %v1131
        %v1874 = vpop.xlane.xlu0 %1873
        %1875 = vmax.xlane.f32.xlu0 %v1134
        %v1876 = vpop.xlane.xlu0 %1875
        %1877 = vmax.xlane.f32.xlu0 %v1139
        %v1878 = vpop.xlane.xlu0 %1877
        %1879 = vmax.xlane.f32.xlu0 %v1142
        %v1880 = vpop.xlane.xlu0 %1879
        %1881 = vmax.xlane.f32.xlu0 %v1147
        %v1882 = vpop.xlane.xlu0 %1881
        %1883 = vmax.xlane.f32.xlu0 %v1150
        %v1884 = vpop.xlane.xlu0 %1883
        %1885 = vmax.xlane.f32.xlu0 %v1155
        %v1886 = vpop.xlane.xlu0 %1885
        %1887 = vmax.xlane.f32.xlu0 %v1158
        %v1888 = vpop.xlane.xlu0 %1887
        %1889 = vmax.xlane.f32.xlu0 %v1163
        %v1890 = vpop.xlane.xlu0 %1889
        %1891 = vmax.xlane.f32.xlu0 %v1166
        %v1892 = vpop.xlane.xlu0 %1891
        %1893 = vmax.xlane.f32.xlu0 %v1171
        %v1894 = vpop.xlane.xlu0 %1893
        %1895 = vmax.xlane.f32.xlu0 %v1174
        %v1896 = vpop.xlane.xlu0 %1895
        %1897 = vmax.xlane.f32.xlu0 %v1179
        %v1898 = vpop.xlane.xlu0 %1897
        %1899 = vmax.xlane.f32.xlu0 %v1182
        %v1900 = vpop.xlane.xlu0 %1899
        %v1901 = vmax.f32 %v1870, %v1878
        %v1902 = vmax.f32 %v1872, %v1880
        %v1903 = vmax.f32 %v1874, %v1882
        %v1904 = vmax.f32 %v1876, %v1884
        %v1905 = vmax.f32 %v1901, %v1886
        %v1906 = vmax.f32 %v1902, %v1888
        %v1907 = vmax.f32 %v1903, %v1890
        %v1908 = vmax.f32 %v1904, %v1892
        %v1909 = vmax.f32 %v1905, %v1894
        %v1910 = vmax.f32 %v1906, %v1896
        %v1911 = vmax.f32 %v1907, %v1898
        %v1912 = vmax.f32 %v1908, %v1900
        %v1913 = vmax.f32 %v1909, %v1910
        %v1914 = vmax.f32 %v1911, %v1912
        %v1915 = vmax.f32 %v1913, %v1914
        %v1916 = vrot.slane %v1915, 4
        %v1917 = vmax.f32 %v1915, %v1916
        %v1918 = vrot.slane %v1917, 2
        %v1919 = vmax.f32 %v1917, %v1918
        %v1920 = vrot.slane %v1919, 1
        %v1921 = vmax.f32 %v1919, %v1920
        %s1922 = vtos %v1921
        %v1923 = vsub.f32 %v1123, %v1870
        %v1924 = vsub.f32 %v1126, %v1872
        %v1925 = vsub.f32 %v1131, %v1874
        %v1926 = vsub.f32 %v1134, %v1876
        %v1927 = vsub.f32 %v1139, %v1878
        %v1928 = vsub.f32 %v1142, %v1880
        %v1929 = vsub.f32 %v1147, %v1882
        %v1930 = vsub.f32 %v1150, %v1884
        %v1931 = vsub.f32 %v1155, %v1886
        %v1932 = vsub.f32 %v1158, %v1888
        %v1933 = vsub.f32 %v1163, %v1890
        %v1934 = vsub.f32 %v1166, %v1892
        %v1935 = vsub.f32 %v1171, %v1894
        %v1936 = vsub.f32 %v1174, %v1896
        %v1937 = vsub.f32 %v1179, %v1898
        %v1938 = vsub.f32 %v1182, %v1900
        %v1939 = vmul.f32 %v1923, 1.442695
        %v1940 = vpow.pop %v1939
        %v1941 = vmul.f32 %v1924, 1.442695
        %v1942 = vpow.pop %v1941
        %v1943 = vmul.f32 %v1925, 1.442695
        %v1944 = vpow.pop %v1943
        %v1945 = vmul.f32 %v1926, 1.442695
        %v1946 = vpow.pop %v1945
        %v1947 = vmul.f32 %v1927, 1.442695
        %v1948 = vpow.pop %v1947
        %v1949 = vmul.f32 %v1928, 1.442695
        %v1950 = vpow.pop %v1949
        %v1951 = vmul.f32 %v1929, 1.442695
        %v1952 = vpow.pop %v1951
        %v1953 = vmul.f32 %v1930, 1.442695
        %v1954 = vpow.pop %v1953
        %v1955 = vmul.f32 %v1931, 1.442695
        %v1956 = vpow.pop %v1955
        %v1957 = vmul.f32 %v1932, 1.442695
        %v1958 = vpow.pop %v1957
        %v1959 = vmul.f32 %v1933, 1.442695
        %v1960 = vpow.pop %v1959
        %v1961 = vmul.f32 %v1934, 1.442695
        %v1962 = vpow.pop %v1961
        %v1963 = vmul.f32 %v1935, 1.442695
        %v1964 = vpow.pop %v1963
        %v1965 = vmul.f32 %v1936, 1.442695
        %v1966 = vpow.pop %v1965
        %v1967 = vmul.f32 %v1937, 1.442695
        %v1968 = vpow.pop %v1967
        %v1969 = vmul.f32 %v1938, 1.442695
        %v1970 = vpow.pop %v1969
        %1971 = vadd.xlane.f32.xlu0 %v1940
        %v1972 = vpop.xlane.xlu0 %1971
        %1973 = vadd.xlane.f32.xlu0 %v1942
        %v1974 = vpop.xlane.xlu0 %1973
        %1975 = vadd.xlane.f32.xlu0 %v1944
        %v1976 = vpop.xlane.xlu0 %1975
        %1977 = vadd.xlane.f32.xlu0 %v1946
        %v1978 = vpop.xlane.xlu0 %1977
        %1979 = vadd.xlane.f32.xlu0 %v1948
        %v1980 = vpop.xlane.xlu0 %1979
        %1981 = vadd.xlane.f32.xlu0 %v1950
        %v1982 = vpop.xlane.xlu0 %1981
        %1983 = vadd.xlane.f32.xlu0 %v1952
        %v1984 = vpop.xlane.xlu0 %1983
        %1985 = vadd.xlane.f32.xlu0 %v1954
        %v1986 = vpop.xlane.xlu0 %1985
        %1987 = vadd.xlane.f32.xlu0 %v1956
        %v1988 = vpop.xlane.xlu0 %1987
        %1989 = vadd.xlane.f32.xlu0 %v1958
        %v1990 = vpop.xlane.xlu0 %1989
        %1991 = vadd.xlane.f32.xlu0 %v1960
        %v1992 = vpop.xlane.xlu0 %1991
        %1993 = vadd.xlane.f32.xlu0 %v1962
        %v1994 = vpop.xlane.xlu0 %1993
        %1995 = vadd.xlane.f32.xlu0 %v1964
        %v1996 = vpop.xlane.xlu0 %1995
        %1997 = vadd.xlane.f32.xlu0 %v1966
        %v1998 = vpop.xlane.xlu0 %1997
        %1999 = vadd.xlane.f32.xlu0 %v1968
        %v2000 = vpop.xlane.xlu0 %1999
        %2001 = vadd.xlane.f32.xlu0 %v1970
        %v2002 = vpop.xlane.xlu0 %2001
        %v2003 = vlog2.pop %v1972
        %v2004 = vmul.f32 %v2003, 0.6931472
        %v2005 = vlog2.pop %v1974
        %v2006 = vmul.f32 %v2005, 0.6931472
        %v2007 = vlog2.pop %v1976
        %v2008 = vmul.f32 %v2007, 0.6931472
        %v2009 = vlog2.pop %v1978
        %v2010 = vmul.f32 %v2009, 0.6931472
        %v2011 = vlog2.pop %v1980
        %v2012 = vmul.f32 %v2011, 0.6931472
        %v2013 = vlog2.pop %v1982
        %v2014 = vmul.f32 %v2013, 0.6931472
        %v2015 = vlog2.pop %v1984
        %v2016 = vmul.f32 %v2015, 0.6931472
        %v2017 = vlog2.pop %v1986
        %v2018 = vmul.f32 %v2017, 0.6931472
        %v2019 = vlog2.pop %v1988
        %v2020 = vmul.f32 %v2019, 0.6931472
        %v2021 = vlog2.pop %v1990
        %v2022 = vmul.f32 %v2021, 0.6931472
        %v2023 = vlog2.pop %v1992
        %v2024 = vmul.f32 %v2023, 0.6931472
        %v2025 = vlog2.pop %v1994
        %v2026 = vmul.f32 %v2025, 0.6931472
        %v2027 = vlog2.pop %v1996
        %v2028 = vmul.f32 %v2027, 0.6931472
        %v2029 = vlog2.pop %v1998
        %v2030 = vmul.f32 %v2029, 0.6931472
        %v2031 = vlog2.pop %v2000
        %v2032 = vmul.f32 %v2031, 0.6931472
        %v2033 = vlog2.pop %v2002
        %v2034 = vmul.f32 %v2033, 0.6931472
        %v2035 = vadd.f32 %v1870, %v2004
        %v2036 = vadd.f32 %v1872, %v2006
        %v2037 = vadd.f32 %v1874, %v2008
        %v2038 = vadd.f32 %v1876, %v2010
        %v2039 = vadd.f32 %v1878, %v2012
        %v2040 = vadd.f32 %v1880, %v2014
        %v2041 = vadd.f32 %v1882, %v2016
        %v2042 = vadd.f32 %v1884, %v2018
        %v2043 = vadd.f32 %v1886, %v2020
        %v2044 = vadd.f32 %v1888, %v2022
        %v2045 = vadd.f32 %v1890, %v2024
        %v2046 = vadd.f32 %v1892, %v2026
        %v2047 = vadd.f32 %v1894, %v2028
        %v2048 = vadd.f32 %v1896, %v2030
        %v2049 = vadd.f32 %v1898, %v2032
        %v2050 = vadd.f32 %v1900, %v2034
        %v2051 = vstv %s1922
        %v2052 = vsub.f32 %v1870, %v2051
        %v2053 = vsub.f32 %v1872, %v2051
        %v2054 = vsub.f32 %v1874, %v2051
        %v2055 = vsub.f32 %v1876, %v2051
        %v2056 = vsub.f32 %v1878, %v2051
        %v2057 = vsub.f32 %v1880, %v2051
        %v2058 = vsub.f32 %v1882, %v2051
        %v2059 = vsub.f32 %v1884, %v2051
        %v2060 = vsub.f32 %v1886, %v2051
        %v2061 = vsub.f32 %v1888, %v2051
        %v2062 = vsub.f32 %v1890, %v2051
        %v2063 = vsub.f32 %v1892, %v2051
        %v2064 = vsub.f32 %v1894, %v2051
        %v2065 = vsub.f32 %v1896, %v2051
        %v2066 = vsub.f32 %v1898, %v2051
        %v2067 = vsub.f32 %v1900, %v2051
        %v2068 = vmul.f32 %v2052, 1.442695
        %v2069 = vpow.pop %v2068
        %v2070 = vmul.f32 %v2053, 1.442695
        %v2071 = vpow.pop %v2070
        %v2072 = vmul.f32 %v2054, 1.442695
        %v2073 = vpow.pop %v2072
        %v2074 = vmul.f32 %v2055, 1.442695
        %v2075 = vpow.pop %v2074
        %v2076 = vmul.f32 %v2056, 1.442695
        %v2077 = vpow.pop %v2076
        %v2078 = vmul.f32 %v2057, 1.442695
        %v2079 = vpow.pop %v2078
        %v2080 = vmul.f32 %v2058, 1.442695
        %v2081 = vpow.pop %v2080
        %v2082 = vmul.f32 %v2059, 1.442695
        %v2083 = vpow.pop %v2082
        %v2084 = vmul.f32 %v2060, 1.442695
        %v2085 = vpow.pop %v2084
        %v2086 = vmul.f32 %v2061, 1.442695
        %v2087 = vpow.pop %v2086
        %v2088 = vmul.f32 %v2062, 1.442695
        %v2089 = vpow.pop %v2088
        %v2090 = vmul.f32 %v2063, 1.442695
        %v2091 = vpow.pop %v2090
        %v2092 = vmul.f32 %v2064, 1.442695
        %v2093 = vpow.pop %v2092
        %v2094 = vmul.f32 %v2065, 1.442695
        %v2095 = vpow.pop %v2094
        %v2096 = vmul.f32 %v2066, 1.442695
        %v2097 = vpow.pop %v2096
        %v2098 = vmul.f32 %v2067, 1.442695
        %v2099 = vpow.pop %v2098
        %v2100 = vmul.f32 %v1940, %v2069
        %v2101 = vmul.f32 %v1942, %v2071
        %v2102 = vmul.f32 %v1944, %v2073
        %v2103 = vmul.f32 %v1946, %v2075
        %v2104 = vmul.f32 %v1948, %v2077
        %v2105 = vmul.f32 %v1950, %v2079
        %v2106 = vmul.f32 %v1952, %v2081
        %v2107 = vmul.f32 %v1954, %v2083
        %v2108 = vmul.f32 %v1956, %v2085
        %v2109 = vmul.f32 %v1958, %v2087
        %v2110 = vmul.f32 %v1960, %v2089
        %v2111 = vmul.f32 %v1962, %v2091
        %v2112 = vmul.f32 %v1964, %v2093
        %v2113 = vmul.f32 %v1966, %v2095
        %v2114 = vmul.f32 %v1968, %v2097
        %v2115 = vmul.f32 %v1970, %v2099
        %v2116 = vadd.f32 %v2100, %v2101
        %v2117 = vadd.f32 %v2116, %v2102
        %v2118 = vadd.f32 %v2117, %v2103
        %v2119 = vadd.f32 %v2118, %v2104
        %v2120 = vadd.f32 %v2119, %v2105
        %v2121 = vadd.f32 %v2120, %v2106
        %v2122 = vadd.f32 %v2121, %v2107
        %v2123 = vadd.f32 %v2122, %v2108
        %v2124 = vadd.f32 %v2123, %v2109
        %v2125 = vadd.f32 %v2124, %v2110
        %v2126 = vadd.f32 %v2125, %v2111
        %v2127 = vadd.f32 %v2126, %v2112
        %v2128 = vadd.f32 %v2127, %v2113
        %v2129 = vadd.f32 %v2128, %v2114
        %v2130 = vadd.f32 %v2129, %v2115
        %v2131 = vrot.slane %v2130, 4
        %v2132 = vadd.f32 %v2130, %v2131
        %v2133 = vrot.slane %v2132, 2
        %v2134 = vadd.f32 %v2132, %v2133
        %v2135 = vrot.slane %v2134, 1
        %v2136 = vadd.f32 %v2134, %v2135
        %v2137 = vlog2.pop %v2136
        %v2138 = vmul.f32 %v2137, 0.6931472
        %v2139 = vadd.f32 %v2051, %v2138
        %2140 = vadd.xlane.f32.xlu0 %v1853
        %v2141 = vpop.xlane.xlu0 %2140
        %2142 = vadd.xlane.f32.xlu0 %v1854
        %v2143 = vpop.xlane.xlu0 %2142
        %2144 = vadd.xlane.f32.xlu0 %v1855
        %v2145 = vpop.xlane.xlu0 %2144
        %2146 = vadd.xlane.f32.xlu0 %v1856
        %v2147 = vpop.xlane.xlu0 %2146
        %2148 = vadd.xlane.f32.xlu0 %v1857
        %v2149 = vpop.xlane.xlu0 %2148
        %2150 = vadd.xlane.f32.xlu0 %v1858
        %v2151 = vpop.xlane.xlu0 %2150
        %2152 = vadd.xlane.f32.xlu0 %v1859
        %v2153 = vpop.xlane.xlu0 %2152
        %2154 = vadd.xlane.f32.xlu0 %v1860
        %v2155 = vpop.xlane.xlu0 %2154
        %2156 = vadd.xlane.f32.xlu0 %v1861
        %v2157 = vpop.xlane.xlu0 %2156
        %2158 = vadd.xlane.f32.xlu0 %v1862
        %v2159 = vpop.xlane.xlu0 %2158
        %2160 = vadd.xlane.f32.xlu0 %v1863
        %v2161 = vpop.xlane.xlu0 %2160
        %2162 = vadd.xlane.f32.xlu0 %v1864
        %v2163 = vpop.xlane.xlu0 %2162
        %2164 = vadd.xlane.f32.xlu0 %v1865
        %v2165 = vpop.xlane.xlu0 %2164
        %2166 = vadd.xlane.f32.xlu0 %v1866
        %v2167 = vpop.xlane.xlu0 %2166
        %2168 = vadd.xlane.f32.xlu0 %v1867
        %v2169 = vpop.xlane.xlu0 %2168
        %2170 = vadd.xlane.f32.xlu0 %v1868
        %v2171 = vpop.xlane.xlu0 %2170
        %v2172 = vadd.f32 %v1853, %v1854
        %v2173 = vadd.f32 %v2172, %v1855
        %v2174 = vadd.f32 %v2173, %v1856
        %v2175 = vadd.f32 %v2174, %v1857
        %v2176 = vadd.f32 %v2175, %v1858
        %v2177 = vadd.f32 %v2176, %v1859
        %v2178 = vadd.f32 %v2177, %v1860
        %v2179 = vadd.f32 %v2178, %v1861
        %v2180 = vadd.f32 %v2179, %v1862
        %v2181 = vadd.f32 %v2180, %v1863
        %v2182 = vadd.f32 %v2181, %v1864
        %v2183 = vadd.f32 %v2182, %v1865
        %v2184 = vadd.f32 %v2183, %v1866
        %v2185 = vadd.f32 %v2184, %v1867
        %v2186 = vadd.f32 %v2185, %v1868
        %v2187 = vrot.slane %v2186, 4
        %v2188 = vadd.f32 %v2186, %v2187
        %v2189 = vrot.slane %v2188, 2
        %v2190 = vadd.f32 %v2188, %v2189
        %v2191 = vrot.slane %v2190, 1
        %v2192 = vadd.f32 %v2190, %v2191
        %v2193 = vmul.f32 %v2141, %v2035
        %v2194 = vmul.f32 %v2143, %v2036
        %v2195 = vmul.f32 %v2145, %v2037
        %v2196 = vmul.f32 %v2147, %v2038
        %v2197 = vmul.f32 %v2149, %v2039
        %v2198 = vmul.f32 %v2151, %v2040
        %v2199 = vmul.f32 %v2153, %v2041
        %v2200 = vmul.f32 %v2155, %v2042
        %v2201 = vmul.f32 %v2157, %v2043
        %v2202 = vmul.f32 %v2159, %v2044
        %v2203 = vmul.f32 %v2161, %v2045
        %v2204 = vmul.f32 %v2163, %v2046
        %v2205 = vmul.f32 %v2165, %v2047
        %v2206 = vmul.f32 %v2167, %v2048
        %v2207 = vmul.f32 %v2169, %v2049
        %v2208 = vmul.f32 %v2171, %v2050
        %vm2209 = vcmask 7168
        %v2210 = vsel %vm2209, %v2193, 0.0
        %v2211 = vsel %vm2209, %v2194, 0.0
        %v2212 = vadd.f32 %v2210, %v2211
        %v2213 = vsel %vm2209, %v2195, 0.0
        %v2214 = vadd.f32 %v2212, %v2213
        %v2215 = vsel %vm2209, %v2196, 0.0
        %v2216 = vadd.f32 %v2214, %v2215
        %v2217 = vsel %vm2209, %v2197, 0.0
        %v2218 = vadd.f32 %v2216, %v2217
        %v2219 = vsel %vm2209, %v2198, 0.0
        %v2220 = vadd.f32 %v2218, %v2219
        %v2221 = vsel %vm2209, %v2199, 0.0
        %v2222 = vadd.f32 %v2220, %v2221
        %v2223 = vsel %vm2209, %v2200, 0.0
        %v2224 = vadd.f32 %v2222, %v2223
        %v2225 = vsel %vm2209, %v2201, 0.0
        %v2226 = vadd.f32 %v2224, %v2225
        %v2227 = vsel %vm2209, %v2202, 0.0
        %v2228 = vadd.f32 %v2226, %v2227
        %v2229 = vsel %vm2209, %v2203, 0.0
        %v2230 = vadd.f32 %v2228, %v2229
        %v2231 = vsel %vm2209, %v2204, 0.0
        %v2232 = vadd.f32 %v2230, %v2231
        %v2233 = vsel %vm2209, %v2205, 0.0
        %v2234 = vadd.f32 %v2232, %v2233
        %v2235 = vsel %vm2209, %v2206, 0.0
        %v2236 = vadd.f32 %v2234, %v2235
        %v2237 = vsel %vm2209, %v2207, 0.0
        %v2238 = vadd.f32 %v2236, %v2237
        %v2239 = vsel %vm2209, %v2208, 0.0
        %v2240 = vadd.f32 %v2238, %v2239
        %2241 = vadd.xlane.f32.xlu0 %v2240
        %v2242 = vpop.xlane.xlu0 %2241
        %v2243 = vrot.slane %v2242, 4
        %v2244 = vadd.f32 %v2242, %v2243
        %v2245 = vrot.slane %v2244, 2
        %v2246 = vadd.f32 %v2244, %v2245
        %v2247 = vrot.slane %v2246, 1
        %v2248 = vadd.f32 %v2246, %v2247
        %s2249 = vtos %v2248
        %v2250 = vmul.f32 %v2192, %v2139
        %vm2251 = vcmask 1040384
        %v2252 = vsel %vm2251, %v2250, 0.0
        %2253 = vadd.xlane.f32.xlu0 %v2252
        %v2254 = vpop.xlane.xlu0 %2253
        %v2255 = vrot.slane %v2254, 4
        %v2256 = vadd.f32 %v2254, %v2255
        %v2257 = vrot.slane %v2256, 2
        %v2258 = vadd.f32 %v2256, %v2257
        %v2259 = vrot.slane %v2258, 1
        %v2260 = vadd.f32 %v2258, %v2259
        %s2261 = vtos %v2260
        %s2262 = sadd.f32 %s2249, %s2261
        %v2263 = vmul.f32 %v1853, %v1123
        %v2264 = vmul.f32 %v1854, %v1126
        %v2265 = vmul.f32 %v1855, %v1131
        %v2266 = vmul.f32 %v1856, %v1134
        %v2267 = vmul.f32 %v1857, %v1139
        %v2268 = vmul.f32 %v1858, %v1142
        %v2269 = vmul.f32 %v1859, %v1147
        %v2270 = vmul.f32 %v1860, %v1150
        %v2271 = vmul.f32 %v1861, %v1155
        %v2272 = vmul.f32 %v1862, %v1158
        %v2273 = vmul.f32 %v1863, %v1163
        %v2274 = vmul.f32 %v1864, %v1166
        %v2275 = vmul.f32 %v1865, %v1171
        %v2276 = vmul.f32 %v1866, %v1174
        %v2277 = vmul.f32 %v1867, %v1179
        %v2278 = vmul.f32 %v1868, %v1182
        %v2279 = vadd.f32 %v2263, %v2264
        %v2280 = vadd.f32 %v2279, %v2265
        %v2281 = vadd.f32 %v2280, %v2266
        %v2282 = vadd.f32 %v2281, %v2267
        %v2283 = vadd.f32 %v2282, %v2268
        %v2284 = vadd.f32 %v2283, %v2269
        %v2285 = vadd.f32 %v2284, %v2270
        %v2286 = vadd.f32 %v2285, %v2271
        %v2287 = vadd.f32 %v2286, %v2272
        %v2288 = vadd.f32 %v2287, %v2273
        %v2289 = vadd.f32 %v2288, %v2274
        %v2290 = vadd.f32 %v2289, %v2275
        %v2291 = vadd.f32 %v2290, %v2276
        %v2292 = vadd.f32 %v2291, %v2277
        %v2293 = vadd.f32 %v2292, %v2278
        %2294 = vadd.xlane.f32.xlu0 %v2293
        %v2295 = vpop.xlane.xlu0 %2294
        %v2296 = vrot.slane %v2295, 4
        %v2297 = vadd.f32 %v2295, %v2296
        %v2298 = vrot.slane %v2297, 2
        %v2299 = vadd.f32 %v2297, %v2298
        %v2300 = vrot.slane %v2299, 1
        %v2301 = vadd.f32 %v2299, %v2300
        %s2302 = vtos %v2301
        %s2303 = smul.f32 %s2302, 2.0
        %s2304 = ssub.f32 %s2262, %s2303
        %v2305 = vsel %vm2209, %v2141, 0.0
        %v2306 = vsel %vm2209, %v2143, 0.0
        %v2307 = vadd.f32 %v2305, %v2306
        %v2308 = vsel %vm2209, %v2145, 0.0
        %v2309 = vadd.f32 %v2307, %v2308
        %v2310 = vsel %vm2209, %v2147, 0.0
        %v2311 = vadd.f32 %v2309, %v2310
        %v2312 = vsel %vm2209, %v2149, 0.0
        %v2313 = vadd.f32 %v2311, %v2312
        %v2314 = vsel %vm2209, %v2151, 0.0
        %v2315 = vadd.f32 %v2313, %v2314
        %v2316 = vsel %vm2209, %v2153, 0.0
        %v2317 = vadd.f32 %v2315, %v2316
        %v2318 = vsel %vm2209, %v2155, 0.0
        %v2319 = vadd.f32 %v2317, %v2318
        %v2320 = vsel %vm2209, %v2157, 0.0
        %v2321 = vadd.f32 %v2319, %v2320
        %v2322 = vsel %vm2209, %v2159, 0.0
        %v2323 = vadd.f32 %v2321, %v2322
        %v2324 = vsel %vm2209, %v2161, 0.0
        %v2325 = vadd.f32 %v2323, %v2324
        %v2326 = vsel %vm2209, %v2163, 0.0
        %v2327 = vadd.f32 %v2325, %v2326
        %v2328 = vsel %vm2209, %v2165, 0.0
        %v2329 = vadd.f32 %v2327, %v2328
        %v2330 = vsel %vm2209, %v2167, 0.0
        %v2331 = vadd.f32 %v2329, %v2330
        %v2332 = vsel %vm2209, %v2169, 0.0
        %v2333 = vadd.f32 %v2331, %v2332
        %v2334 = vsel %vm2209, %v2171, 0.0
        %v2335 = vadd.f32 %v2333, %v2334
        %2336 = vadd.xlane.f32.xlu0 %v2335
        %v2337 = vpop.xlane.xlu0 %2336
        %v2338 = vrot.slane %v2337, 4
        %v2339 = vadd.f32 %v2337, %v2338
        %v2340 = vrot.slane %v2339, 2
        %v2341 = vadd.f32 %v2339, %v2340
        %v2342 = vrot.slane %v2341, 1
        %v2343 = vadd.f32 %v2341, %v2342
        %s2344 = vtos %v2343
        %vm2345 = vcmp.eq.s32.totalorder %v339, 0
        %v2346 = vstv %s2304
        %v2347 = vsel %vm2345, %v2346, 0.0
        %vm2348 = vcmp.eq.s32.totalorder %v339, 1
        %v2349 = vstv %s2344
        %v2350 = vsel %vm2348, %v2349, 0.0
        %v2351 = vadd.f32 %v2347, %v2350
        %2352 = vst [vmem:[%s301] sm:$0xff] %v2351
        %s2353 = sand.u32 %s162, 1
        %s2354 = scalar_lea.sflag [#allocation4], %s2353
        %s2355 = sand.u32 %s162, 1
        %s2356 = smul.addr %s2355, 8
        %s2357 = scalar_lea.vmem [#allocation5], %s2356
        // Predicated region
        $region45: #{tpu_custom_call.1} parent=39 // pred_check
          %p2358 = pneg %p172
        $region46: #{tpu_custom_call.1} parent=39 // pred_check_branch
          %2360 = sbr.rel (%p2358) target = $region48
        $region47: #{tpu_custom_call.1} parent=39 // pred_region
          %s2362 = ssub.s32 128, 128
          %2363 = vsyncadd %s2354, %s2362
          %s2364 = smul.addr %s22, 128
          %s2365 = scalar_lea.hbm %s5, %s2364
          %s2367 = sshll.u32 %s2357, 4
          %s2368 = int_to_ptr.vmem [resolvable:$true] %s2367
          %2370 = dma.vmem_to_hbm [thread:$0]  %s2368, 128, %s2365, %s2354
        $region48: #{tpu_custom_call.1} parent=39 // pred_fallthru
          _
      $region40: #{tpu_custom_call.1} parent=5 // pred_fallthru
        _
      %p2371 = scmp.le.s32.totalorder 2, %s17
      // Predicated region
      $region49: #{tpu_custom_call.1} parent=5 // pred_check
        %p2372 = pneg %p2371
      $region50: #{tpu_custom_call.1} parent=5 // pred_check_branch
        %2374 = sbr.rel (%p2372) target = $region52
      $region51: #{tpu_custom_call.1} parent=5 // pred_region
        %s2375 = ssub.s32 %s17, 2
        // Predicated region
        $region53: #{tpu_custom_call.1} parent=51 // pred_check
          %p2376 = pneg %p178
        $region54: #{tpu_custom_call.1} parent=51 // pred_check_branch
          %2378 = sbr.rel (%p2376) target = $region56
        $region55: #{tpu_custom_call.1} parent=51 // pred_region
          %s2379 = sand.u32 %s163, 1
          %s2380 = scalar_lea.sflag [#allocation4], %s2379
          %s2381 = sand.u32 %s163, 1
          %s2382 = smul.addr %s2381, 8
          %s2383 = scalar_lea.vmem [#allocation5], %s2382
          %2384 = dma.done %s2380, 128
        $region56: #{tpu_custom_call.1} parent=51 // pred_fallthru
          _
      $region52: #{tpu_custom_call.1} parent=5 // pred_fallthru
        _
    $region6: #{tpu_custom_call.1} parent=1 // loop_footer
      %s21 = sadd.s32 1, %s17
    $region7: #{tpu_custom_call.1} parent=1 // loop_footer_branch
      %16 = sbr.rel target = $region3
    $region8: #{tpu_custom_call.1} parent=1 // loop_exit
      _
    %2385 = vsyncpa [#allocation3], 1
    %s2386 = scalar_lea.sflag [#allocation3], 1
    %2387 = vsyncpa %s2386, 1
    %2388 = vsyncpa [#allocation4], 1
    %s2389 = scalar_lea.sflag [#allocation4], 1
    %2390 = vsyncpa %s2389, 1

</llo_original>
